<compile_context>
chip_gen: v6e
topology: v6e:2x2x1
jax: 0.10.0
libtpu: 0.0.40
codegen_flags: <defaults>
</compile_context>

<pallas_src>
import math

import jax
import jax.numpy as jnp
import numpy as np
from jax.experimental import pallas as pl
from jax.experimental.pallas import tpu as pltpu

NEG_SLOPE = 0.2
INV_SQRT2 = 1.0 / math.sqrt(2.0)


# --------------------------------- kernel ---------------------------------- #
def make_kernel(TN, H, W, Cin, Cout, mm_dtype):
    """Fused res-block kernel for fixed (TN, H, W, Cin, Cout)."""
    H2, W2 = H // 2, W // 2
    Lin, Lout = W * Cin, W * Cout
    f32 = jnp.float32

    def conv3(src_ref, w_ref, L):
        """3x3 conv as 3 row-matmuls.  H-windows are loaded directly from the Ref
        (no concat / slice materialization); W offsets and W zero-padding are baked
        into w_ref[kh] : (L, W*Cout).  Accumulation in f32."""
        acc = None
        for kh in range(3):                                   # unrolled at trace time
            lhs = src_ref[:, kh:kh + H, :].reshape(TN * H, L).astype(mm_dtype)
            t = jnp.dot(lhs, w_ref[kh], preferred_element_type=f32)
            acc = t if acc is None else acc + t
        return acc.reshape(TN, H, Lout)                       # (TN, H, W*Cout) f32

    def kernel(x_ref, w1_ref, cb1_ref, w2_ref, cb2_ref,
               pm_ref, ps_ref, bs_ref, o_ref, h1_ref):
        # ---- CoordConvLayer 1: conv + precomputed (coord term + bias) + leaky relu
        a1 = conv3(x_ref, w1_ref, Lin) + cb1_ref[...]          # cb broadcast over TN
        h1 = jnp.where(a1 >= 0, a1, NEG_SLOPE * a1)            # f32

        # ---- H-pad h1 inside a VMEM scratch (edge rows zero, body rows 1..H)
        h1_ref[:, 0:1, :] = jnp.zeros((TN, 1, Lout), f32)
        h1_ref[:, H + 1:H + 2, :] = jnp.zeros((TN, 1, Lout), f32)
        h1_ref[:, 1:H + 1, :] = h1

        # ---- CoordConvLayer 2 (windows read straight from the scratch Ref)
        a2 = conv3(h1_ref, w2_ref, Lout) + cb2_ref[...]
        h2 = jnp.where(a2 >= 0, a2, NEG_SLOPE * a2)            # (TN, H, W*Cout) f32

        # ---- pool + skip, all in f32:
        #   W-pool (x 0.25/sqrt2) folded into pm; 1x1 skip conv (+ same scales) folded
        #   into ps; H-pool is a sublane-pair sum (no matmul, no ah matrix).
        pre = jnp.dot(h2.reshape(TN * H, Lout), pm_ref[...],
                      preferred_element_type=f32)
        xs = x_ref[:, 1:H + 1, :].reshape(TN * H, Lin)         # un-padded f32 input rows
        pre = pre + jnp.dot(xs, ps_ref[...], preferred_element_type=f32)
        out = pre.reshape(TN * H2, 2, W2 * Cout).sum(axis=1) + bs_ref[...]

        o_ref[...] = out.astype(o_ref.dtype)                   # lane-dense (W2*Cout) store

    return kernel


# -------------------- parameter-only constants (run ONCE) ------------------- #
def prepare_params(params, H, W, mm_dtype=jnp.bfloat16):
    """Hoisted per-parameter-set prep: coord-bias conv, row-matmul weights, pool/skip
    matrices.  Call once per parameter set; pass the result to the jitted forward."""
    f32 = jnp.float32
    Cin = params["w1_oihw"].shape[1] - 2
    Cout = params["w1_oihw"].shape[0]
    W2 = W // 2

    # batch-independent coord-channel contribution (+ per-layer conv bias)
    yy = (jnp.arange(H, dtype=f32) / (H - 1)) * 2.0 - 1.0
    xx = (jnp.arange(W, dtype=f32) / (W - 1)) * 2.0 - 1.0
    coords = jnp.stack([jnp.broadcast_to(yy[:, None], (H, W)),
                        jnp.broadcast_to(xx[None, :], (H, W))], axis=0)[None]   # (1,2,H,W)

    def coord_bias(w_oihw, cin_main, b):
        wc = w_oihw[:, cin_main:, :, :]                                  # (Cout, 2, 3, 3)
        cb = jax.lax.conv_general_dilated(
            coords, wc, (1, 1), ((1, 1), (1, 1)),
            dimension_numbers=("NCHW", "OIHW", "NCHW"))[0]               # (Cout, H, W)
        cb = jnp.transpose(cb, (1, 2, 0)) + b[None, None, :]             # (H, W, Cout)
        return cb.reshape(H, W * Cout).astype(f32)                       # un-tiled

    def row_weight(w_oihw, ci):
        # "row matmul" weights (3, W*ci, W*Cout): W offsets + W zero-pad baked in.
        # TODO(synk): O(W^2*ci*Cout) -> replace with channels-on-lane layout for real sizes.
        w = jnp.transpose(w_oihw[:, :ci, :, :], (2, 3, 1, 0))            # (3,3,ci,Cout)
        wi = jnp.arange(W)[:, None]                                      # input col
        wo = jnp.arange(W)[None, :]                                      # output col
        kw = wi - wo + 1                                                 # tap index
        valid = (kw >= 0) & (kw < 3)
        g = w[:, jnp.clip(kw, 0, 2), :, :]                               # (3, W, W, ci, Cout)
        g = jnp.where(valid[None, :, :, None, None], g, 0.0)
        g = jnp.transpose(g, (0, 1, 3, 2, 4))                            # (3, W, ci, W, Cout)
        return g.reshape(3, W * ci, W * Cout).astype(mm_dtype)

    # W-pool / skip / bias matrices, kept in f32 (tiny matmuls -> free bf16-path accuracy)
    sel = (jnp.arange(W)[:, None] // 2 == jnp.arange(W2)[None, :]).astype(f32)   # (W, W2)
    pm = (0.25 * INV_SQRT2) * jnp.einsum("wv,cd->wcvd", sel, jnp.eye(Cout, dtype=f32))
    ws = jnp.transpose(params["wskip_oihw"][:, :, 0, 0], (1, 0)).astype(f32)     # (Cin, Cout)
    ps = (0.25 * INV_SQRT2) * jnp.einsum("wv,cd->wcvd", sel, ws)
    bsr = (INV_SQRT2 * jnp.tile(params["bskip"][None, :], (W2, 1))).reshape(1, W2 * Cout)

    return dict(
        w1r=row_weight(params["w1_oihw"], Cin),                          # (3, W*Cin,  W*Cout)
        cb1=coord_bias(params["w1_oihw"], Cin, params["b1"]),            # (H, W*Cout)
        w2r=row_weight(params["w2_oihw"], Cout),                         # (3, W*Cout, W*Cout)
        cb2=coord_bias(params["w2_oihw"], Cout, params["b2"]),
        pm=pm.reshape(W * Cout, W2 * Cout).astype(f32),
        ps=ps.reshape(W * Cin, W2 * Cout).astype(f32),
        bsr=bsr.astype(f32),
    )


def pick_tn(N, H, target_rows=256):
    """Images per grid step: keep >= 2 grid steps (megacore + pipelining) while growing
    the per-step matmul M = TN*H toward `target_rows` for MXU row fill."""
    best = 1
    for tn in range(1, N + 1):
        if N % tn:
            continue
        if N // tn >= 2 and tn * H <= target_rows:
            best = tn
    return best


# -------------------------------- forward ----------------------------------- #
def volume_render_res_block(x_nchw, prep):
    """x_nchw: (N, Cin, H, W) f32; prep: output of prepare_params.
    Returns (N, Cout, H//2, W//2) f32."""
    N, Cin, H, W = x_nchw.shape
    f32 = jnp.float32
    mm_dtype = prep["w1r"].dtype
    Cout = prep["cb1"].shape[1] // W
    assert H % 2 == 0 and W % 2 == 0 and H >= 4 and W >= 4
    H2, W2 = H // 2, W // 2
    TN = pick_tn(N, H)

    # input: NHWC, H-pad only, W folded into the lane axis.  Kept in f32 (the skip path
    # consumes it in f32; conv1 casts its matmul operand to mm_dtype in-kernel).
    x = jnp.transpose(x_nchw, (0, 2, 3, 1)).astype(f32)                  # (N, H, W, Cin)
    xpad = jnp.pad(x, ((0, 0), (1, 1), (0, 0), (0, 0)))                  # (N, H+2, W, Cin)
    x_row = xpad.reshape(N, H + 2, W * Cin)

    kernel = make_kernel(TN, H, W, Cin, Cout, mm_dtype)
    out2d = pl.pallas_call(
        kernel,
        out_shape=jax.ShapeDtypeStruct((N * H2, W2 * Cout), f32),
        grid_spec=pltpu.PrefetchScalarGridSpec(
            num_scalar_prefetch=0,
            grid=(N // TN,),
            in_specs=[
                pl.BlockSpec((TN, H + 2, W * Cin), lambda b: (b, 0, 0)),       # x (H-padded, f32)
                pl.BlockSpec((3, W * Cin, W * Cout), lambda b: (0, 0, 0)),     # w1 row-weights
                pl.BlockSpec((H, W * Cout), lambda b: (0, 0)),                 # coord bias 1
                pl.BlockSpec((3, W * Cout, W * Cout), lambda b: (0, 0, 0)),    # w2 row-weights
                pl.BlockSpec((H, W * Cout), lambda b: (0, 0)),                 # coord bias 2
                pl.BlockSpec((W * Cout, W2 * Cout), lambda b: (0, 0)),         # W-pool (main)
                pl.BlockSpec((W * Cin, W2 * Cout), lambda b: (0, 0)),          # W-pool + 1x1 skip
                pl.BlockSpec((1, W2 * Cout), lambda b: (0, 0)),                # skip bias
            ],
            out_specs=pl.BlockSpec((TN * H2, W2 * Cout), lambda b: (b, 0)),
            scratch_shapes=[pltpu.VMEM((TN, H + 2, W * Cout), f32)],           # padded h1
        ),
        compiler_params=pltpu.CompilerParams(dimension_semantics=("parallel",)),
    )(x_row, prep["w1r"], prep["cb1"], prep["w2r"], prep["cb2"],
      prep["pm"], prep["ps"], prep["bsr"])

    out = out2d.reshape(N, H2, W2, Cout)
    return jnp.transpose(out, (0, 3, 1, 2))                              # back to NCHW


# ----------------------- deterministic parameter init ----------------------- #
def init_params(key, in_channel, out_channel):
    ks = jax.random.split(key, 6)
    w1 = 0.1 * jax.random.normal(ks[0], (out_channel, in_channel + 2, 3, 3), jnp.float32)
    b1 = jax.random.uniform(ks[1], (out_channel,), jnp.float32, -0.2, 0.2)
    w2 = 0.1 * jax.random.normal(ks[2], (out_channel, out_channel + 2, 3, 3), jnp.float32)
    b2 = jax.random.uniform(ks[3], (out_channel,), jnp.float32, -0.2, 0.2)
    if out_channel != in_channel:
        ws = 0.1 * jax.random.normal(ks[4], (out_channel, in_channel, 1, 1), jnp.float32)
        bs = jax.random.uniform(ks[5], (out_channel,), jnp.float32, -0.1, 0.1)
    else:
        # skip == identity (skip=None in the PyTorch module) as a 1x1 identity conv
        ws = jnp.eye(in_channel, dtype=jnp.float32)[:, :, None, None]
        bs = jnp.zeros((out_channel,), jnp.float32)
    return dict(w1_oihw=w1, b1=b1, w2_oihw=w2, b2=b2, wskip_oihw=ws, bskip=bs)


# ------------------------- pure-JAX reference (NCHW) ------------------------ #
def reference_forward(x, p):
    def add_coords(t):
        n, c, h, w = t.shape
        yy = (jnp.arange(h, dtype=jnp.float32) / (h - 1)) * 2.0 - 1.0
        xx = (jnp.arange(w, dtype=jnp.float32) / (w - 1)) * 2.0 - 1.0
        yy = jnp.broadcast_to(yy[None, None, :, None], (n, 1, h, w))
        xx = jnp.broadcast_to(xx[None, None, None, :], (n, 1, h, w))
        return jnp.concatenate([t, yy, xx], axis=1)

    def conv(t, w, pad):
        return jax.lax.conv_general_dilated(
            t, w, (1, 1), ((pad, pad), (pad, pad)),
            dimension_numbers=("NCHW", "OIHW", "NCHW"))

    def flrelu(t, b):
        v = t + b[None, :, None, None]
        return jnp.where(v >= 0, v, NEG_SLOPE * v)

    def pool(t):
        n, c, h, w = t.shape
        return t.reshape(n, c, h // 2, 2, w // 2, 2).mean(axis=(3, 5))

    out = flrelu(conv(add_coords(x), p["w1_oihw"], 1), p["b1"])
    out = flrelu(conv(add_coords(out), p["w2_oihw"], 1), p["b2"])
    out = pool(out)
    skip = conv(pool(x), p["wskip_oihw"], 0) + p["bskip"][None, :, None, None]
    return (out + skip) / math.sqrt(2.0)


# ----------------------------------- main ----------------------------------- #
if __name__ == "__main__":
    key = jax.random.PRNGKey(0)
    kx, kp = jax.random.split(key)

    # small shapes; Cout chosen so W/2 * Cout = 128 -> lane-dense output store
    N, Cin, Cout, H, W = 2, 8, 16, 16, 16
    x = jax.random.normal(kx, (N, Cin, H, W), jnp.float32)
    params = init_params(kp, Cin, Cout)
    ref = reference_forward(x, params)

    run = jax.jit(volume_render_res_block)

    # 1) f32-matmul path: bit-faithful to the module, tight tolerance
    prep_f32 = prepare_params(params, H, W, mm_dtype=jnp.float32)        # once per param set
    out_f32 = jax.block_until_ready(run(x, prep_f32))
    assert out_f32.shape == (N, Cout, H // 2, W // 2), out_f32.shape
    np.testing.assert_allclose(np.asarray(out_f32), np.asarray(ref), rtol=1e-4, atol=1e-4)

    # 2) bf16-matmul path (MXU fast path; f32 accumulation / elementwise / pool / skip)
    prep_bf16 = prepare_params(params, H, W, mm_dtype=jnp.bfloat16)
    out_bf16 = jax.block_until_ready(run(x, prep_bf16))
    np.testing.assert_allclose(np.asarray(out_bf16), np.asarray(ref), rtol=5e-2, atol=5e-2)

    print("KERNEL_OK")
</pallas_src>

<mosaic_0001>
module attributes {stable_mosaic.version = 11 : i64} {
  func.func @kernel(%arg0: i32, %arg1: memref<1x18x128xf32, #tpu.memory_space<vmem>>, %arg2: memref<3x128x256xf32, #tpu.memory_space<vmem>>, %arg3: memref<16x256xf32, #tpu.memory_space<vmem>>, %arg4: memref<3x256x256xf32, #tpu.memory_space<vmem>>, %arg5: memref<16x256xf32, #tpu.memory_space<vmem>>, %arg6: memref<256x128xf32, #tpu.memory_space<vmem>>, %arg7: memref<128x128xf32, #tpu.memory_space<vmem>>, %arg8: memref<1x128xf32, #tpu.memory_space<vmem>>, %arg9: memref<8x128xf32, #tpu.memory_space<vmem>>, %arg10: memref<1x18x256xf32, #tpu.memory_space<vmem>>) attributes {dimension_semantics = [#tpu.dimension_semantics<parallel>], iteration_bounds = array<i64: 2>, scalar_prefetch = 0 : i64, scratch_operands = 1 : i64, tpu.core_type = #tpu.core_type<tc>, window_params = [{transform_indices = @transform_0, window_bounds = array<i64: 1, 18, 128>}, {pipeline_mode = #tpu.pipeline_mode<synchronous>, transform_indices = @transform_1, window_bounds = array<i64: 3, 128, 256>}, {pipeline_mode = #tpu.pipeline_mode<synchronous>, transform_indices = @transform_2, window_bounds = array<i64: 16, 256>}, {pipeline_mode = #tpu.pipeline_mode<synchronous>, transform_indices = @transform_3, window_bounds = array<i64: 3, 256, 256>}, {pipeline_mode = #tpu.pipeline_mode<synchronous>, transform_indices = @transform_4, window_bounds = array<i64: 16, 256>}, {pipeline_mode = #tpu.pipeline_mode<synchronous>, transform_indices = @transform_5, window_bounds = array<i64: 256, 128>}, {pipeline_mode = #tpu.pipeline_mode<synchronous>, transform_indices = @transform_6, window_bounds = array<i64: 128, 128>}, {pipeline_mode = #tpu.pipeline_mode<synchronous>, transform_indices = @transform_7, window_bounds = array<i64: 1, 128>}, {transform_indices = @transform_8, window_bounds = array<i64: 8, 128>}]} {
    %c0 = arith.constant 0 : index
    %c0_0 = arith.constant 0 : index
    %c0_1 = arith.constant 0 : index
    %0 = vector.load %arg1[%c0, %c0_0, %c0_1] : memref<1x18x128xf32, #tpu.memory_space<vmem>>, vector<1x16x128xf32>
    %1 = vector.shape_cast %0 : vector<1x16x128xf32> to vector<16x128xf32>
    %c0_2 = arith.constant 0 : index
    %c0_3 = arith.constant 0 : index
    %c0_4 = arith.constant 0 : index
    %2 = vector.load %arg2[%c0_2, %c0_3, %c0_4] : memref<3x128x256xf32, #tpu.memory_space<vmem>>, vector<1x128x256xf32>
    %3 = vector.shape_cast %2 : vector<1x128x256xf32> to vector<128x256xf32>
    %cst = arith.constant dense<0.000000e+00> : vector<16x256xf32>
    %4 = tpu.matmul %1, %3, %cst {dimension_numbers = #tpu.dot_dimension_numbers<[1], [0], [0], [1], [0, 0, 1, 1], [], []>} : vector<16x128xf32>, vector<128x256xf32>, vector<16x256xf32> -> vector<16x256xf32>
    %c0_5 = arith.constant 0 : index
    %c1 = arith.constant 1 : index
    %c0_6 = arith.constant 0 : index
    %5 = vector.load %arg1[%c0_5, %c1, %c0_6] : memref<1x18x128xf32, #tpu.memory_space<vmem>>, vector<1x16x128xf32>
    %6 = vector.shape_cast %5 : vector<1x16x128xf32> to vector<16x128xf32>
    %c1_7 = arith.constant 1 : index
    %c0_8 = arith.constant 0 : index
    %c0_9 = arith.constant 0 : index
    %7 = vector.load %arg2[%c1_7, %c0_8, %c0_9] : memref<3x128x256xf32, #tpu.memory_space<vmem>>, vector<1x128x256xf32>
    %8 = vector.shape_cast %7 : vector<1x128x256xf32> to vector<128x256xf32>
    %cst_10 = arith.constant dense<0.000000e+00> : vector<16x256xf32>
    %9 = tpu.matmul %6, %8, %cst_10 {dimension_numbers = #tpu.dot_dimension_numbers<[1], [0], [0], [1], [0, 0, 1, 1], [], []>} : vector<16x128xf32>, vector<128x256xf32>, vector<16x256xf32> -> vector<16x256xf32>
    %10 = arith.addf %4, %9 : vector<16x256xf32>
    %c0_11 = arith.constant 0 : index
    %c2 = arith.constant 2 : index
    %c0_12 = arith.constant 0 : index
    %11 = vector.load %arg1[%c0_11, %c2, %c0_12] : memref<1x18x128xf32, #tpu.memory_space<vmem>>, vector<1x16x128xf32>
    %12 = vector.shape_cast %11 : vector<1x16x128xf32> to vector<16x128xf32>
    %c2_13 = arith.constant 2 : index
    %c0_14 = arith.constant 0 : index
    %c0_15 = arith.constant 0 : index
    %13 = vector.load %arg2[%c2_13, %c0_14, %c0_15] : memref<3x128x256xf32, #tpu.memory_space<vmem>>, vector<1x128x256xf32>
    %14 = vector.shape_cast %13 : vector<1x128x256xf32> to vector<128x256xf32>
    %cst_16 = arith.constant dense<0.000000e+00> : vector<16x256xf32>
    %15 = tpu.matmul %12, %14, %cst_16 {dimension_numbers = #tpu.dot_dimension_numbers<[1], [0], [0], [1], [0, 0, 1, 1], [], []>} : vector<16x128xf32>, vector<128x256xf32>, vector<16x256xf32> -> vector<16x256xf32>
    %16 = arith.addf %10, %15 : vector<16x256xf32>
    %17 = vector.shape_cast %16 : vector<16x256xf32> to vector<1x16x256xf32>
    %c0_17 = arith.constant 0 : index
    %c0_18 = arith.constant 0 : index
    %18 = vector.load %arg3[%c0_17, %c0_18] : memref<16x256xf32, #tpu.memory_space<vmem>>, vector<16x256xf32>
    %19 = vector.shape_cast %18 : vector<16x256xf32> to vector<1x16x256xf32>
    %20 = arith.addf %17, %19 : vector<1x16x256xf32>
    %cst_19 = arith.constant 0.000000e+00 : f32
    %21 = vector.broadcast %cst_19 : f32 to vector<1x16x256xf32>
    %22 = arith.cmpf oge, %20, %21 : vector<1x16x256xf32>
    %cst_20 = arith.constant 2.000000e-01 : f32
    %23 = vector.broadcast %cst_20 : f32 to vector<1x16x256xf32>
    %24 = arith.mulf %23, %20 : vector<1x16x256xf32>
    %25 = arith.select %22, %20, %24 : vector<1x16x256xi1>, vector<1x16x256xf32>
    %cst_21 = arith.constant 0.000000e+00 : f32
    %26 = vector.broadcast %cst_21 : f32 to vector<1x1x256xf32>
    %c0_22 = arith.constant 0 : index
    %c0_23 = arith.constant 0 : index
    %c0_24 = arith.constant 0 : index
    %27 = vector.load %arg10[%c0_22, %c0_23, %c0_24] : memref<1x18x256xf32, #tpu.memory_space<vmem>>, vector<1x1x256xf32>
    tpu.vector_store %arg10[%c0_22, %c0_23, %c0_24], %26 {strides = array<i32>} : memref<1x18x256xf32, #tpu.memory_space<vmem>>, vector<1x1x256xf32>,
    %cst_25 = arith.constant 0.000000e+00 : f32
    %28 = vector.broadcast %cst_25 : f32 to vector<1x1x256xf32>
    %c0_26 = arith.constant 0 : index
    %c17 = arith.constant 17 : index
    %c0_27 = arith.constant 0 : index
    %29 = vector.load %arg10[%c0_26, %c17, %c0_27] : memref<1x18x256xf32, #tpu.memory_space<vmem>>, vector<1x1x256xf32>
    tpu.vector_store %arg10[%c0_26, %c17, %c0_27], %28 {strides = array<i32>} : memref<1x18x256xf32, #tpu.memory_space<vmem>>, vector<1x1x256xf32>,
    %c0_28 = arith.constant 0 : index
    %c1_29 = arith.constant 1 : index
    %c0_30 = arith.constant 0 : index
    %30 = vector.load %arg10[%c0_28, %c1_29, %c0_30] : memref<1x18x256xf32, #tpu.memory_space<vmem>>, vector<1x16x256xf32>
    tpu.vector_store %arg10[%c0_28, %c1_29, %c0_30], %25 {strides = array<i32>} : memref<1x18x256xf32, #tpu.memory_space<vmem>>, vector<1x16x256xf32>,
    %c0_31 = arith.constant 0 : index
    %c0_32 = arith.constant 0 : index
    %c0_33 = arith.constant 0 : index
    %31 = vector.load %arg10[%c0_31, %c0_32, %c0_33] : memref<1x18x256xf32, #tpu.memory_space<vmem>>, vector<1x16x256xf32>
    %32 = vector.shape_cast %31 : vector<1x16x256xf32> to vector<16x256xf32>
    %c0_34 = arith.constant 0 : index
    %c0_35 = arith.constant 0 : index
    %c0_36 = arith.constant 0 : index
    %33 = vector.load %arg4[%c0_34, %c0_35, %c0_36] : memref<3x256x256xf32, #tpu.memory_space<vmem>>, vector<1x256x256xf32>
    %34 = vector.shape_cast %33 : vector<1x256x256xf32> to vector<256x256xf32>
    %cst_37 = arith.constant dense<0.000000e+00> : vector<16x256xf32>
    %35 = tpu.matmul %32, %34, %cst_37 {dimension_numbers = #tpu.dot_dimension_numbers<[1], [0], [0], [1], [0, 0, 1, 1], [], []>} : vector<16x256xf32>, vector<256x256xf32>, vector<16x256xf32> -> vector<16x256xf32>
    %c0_38 = arith.constant 0 : index
    %c1_39 = arith.constant 1 : index
    %c0_40 = arith.constant 0 : index
    %36 = vector.load %arg10[%c0_38, %c1_39, %c0_40] : memref<1x18x256xf32, #tpu.memory_space<vmem>>, vector<1x16x256xf32>
    %37 = vector.shape_cast %36 : vector<1x16x256xf32> to vector<16x256xf32>
    %c1_41 = arith.constant 1 : index
    %c0_42 = arith.constant 0 : index
    %c0_43 = arith.constant 0 : index
    %38 = vector.load %arg4[%c1_41, %c0_42, %c0_43] : memref<3x256x256xf32, #tpu.memory_space<vmem>>, vector<1x256x256xf32>
    %39 = vector.shape_cast %38 : vector<1x256x256xf32> to vector<256x256xf32>
    %cst_44 = arith.constant dense<0.000000e+00> : vector<16x256xf32>
    %40 = tpu.matmul %37, %39, %cst_44 {dimension_numbers = #tpu.dot_dimension_numbers<[1], [0], [0], [1], [0, 0, 1, 1], [], []>} : vector<16x256xf32>, vector<256x256xf32>, vector<16x256xf32> -> vector<16x256xf32>
    %41 = arith.addf %35, %40 : vector<16x256xf32>
    %c0_45 = arith.constant 0 : index
    %c2_46 = arith.constant 2 : index
    %c0_47 = arith.constant 0 : index
    %42 = vector.load %arg10[%c0_45, %c2_46, %c0_47] : memref<1x18x256xf32, #tpu.memory_space<vmem>>, vector<1x16x256xf32>
    %43 = vector.shape_cast %42 : vector<1x16x256xf32> to vector<16x256xf32>
    %c2_48 = arith.constant 2 : index
    %c0_49 = arith.constant 0 : index
    %c0_50 = arith.constant 0 : index
    %44 = vector.load %arg4[%c2_48, %c0_49, %c0_50] : memref<3x256x256xf32, #tpu.memory_space<vmem>>, vector<1x256x256xf32>
    %45 = vector.shape_cast %44 : vector<1x256x256xf32> to vector<256x256xf32>
    %cst_51 = arith.constant dense<0.000000e+00> : vector<16x256xf32>
    %46 = tpu.matmul %43, %45, %cst_51 {dimension_numbers = #tpu.dot_dimension_numbers<[1], [0], [0], [1], [0, 0, 1, 1], [], []>} : vector<16x256xf32>, vector<256x256xf32>, vector<16x256xf32> -> vector<16x256xf32>
    %47 = arith.addf %41, %46 : vector<16x256xf32>
    %48 = vector.shape_cast %47 : vector<16x256xf32> to vector<1x16x256xf32>
    %c0_52 = arith.constant 0 : index
    %c0_53 = arith.constant 0 : index
    %49 = vector.load %arg5[%c0_52, %c0_53] : memref<16x256xf32, #tpu.memory_space<vmem>>, vector<16x256xf32>
    %50 = vector.shape_cast %49 : vector<16x256xf32> to vector<1x16x256xf32>
    %51 = arith.addf %48, %50 : vector<1x16x256xf32>
    %cst_54 = arith.constant 0.000000e+00 : f32
    %52 = vector.broadcast %cst_54 : f32 to vector<1x16x256xf32>
    %53 = arith.cmpf oge, %51, %52 : vector<1x16x256xf32>
    %cst_55 = arith.constant 2.000000e-01 : f32
    %54 = vector.broadcast %cst_55 : f32 to vector<1x16x256xf32>
    %55 = arith.mulf %54, %51 : vector<1x16x256xf32>
    %56 = arith.select %53, %51, %55 : vector<1x16x256xi1>, vector<1x16x256xf32>
    %57 = vector.shape_cast %56 : vector<1x16x256xf32> to vector<16x256xf32>
    %c0_56 = arith.constant 0 : index
    %c0_57 = arith.constant 0 : index
    %58 = vector.load %arg6[%c0_56, %c0_57] : memref<256x128xf32, #tpu.memory_space<vmem>>, vector<256x128xf32>
    %cst_58 = arith.constant dense<0.000000e+00> : vector<16x128xf32>
    %59 = tpu.matmul %57, %58, %cst_58 {dimension_numbers = #tpu.dot_dimension_numbers<[1], [0], [0], [1], [0, 0, 1, 1], [], []>} : vector<16x256xf32>, vector<256x128xf32>, vector<16x128xf32> -> vector<16x128xf32>
    %c0_59 = arith.constant 0 : index
    %c1_60 = arith.constant 1 : index
    %c0_61 = arith.constant 0 : index
    %60 = vector.load %arg1[%c0_59, %c1_60, %c0_61] : memref<1x18x128xf32, #tpu.memory_space<vmem>>, vector<1x16x128xf32>
    %61 = vector.shape_cast %60 : vector<1x16x128xf32> to vector<16x128xf32>
    %c0_62 = arith.constant 0 : index
    %c0_63 = arith.constant 0 : index
    %62 = vector.load %arg7[%c0_62, %c0_63] : memref<128x128xf32, #tpu.memory_space<vmem>>, vector<128x128xf32>
    %cst_64 = arith.constant dense<0.000000e+00> : vector<16x128xf32>
    %63 = tpu.matmul %61, %62, %cst_64 {dimension_numbers = #tpu.dot_dimension_numbers<[1], [0], [0], [1], [0, 0, 1, 1], [], []>} : vector<16x128xf32>, vector<128x128xf32>, vector<16x128xf32> -> vector<16x128xf32>
    %64 = arith.addf %59, %63 : vector<16x128xf32>
    %65 = vector.shape_cast %64 : vector<16x128xf32> to vector<8x2x128xf32>
    %cst_65 = arith.constant dense<0.000000e+00> : vector<8x128xf32>
    %66 = vector.multi_reduction <add>, %65, %cst_65 [1] : vector<8x2x128xf32> to vector<8x128xf32>
    %c0_66 = arith.constant 0 : index
    %c0_67 = arith.constant 0 : index
    %67 = vector.load %arg8[%c0_66, %c0_67] : memref<1x128xf32, #tpu.memory_space<vmem>>, vector<1x128xf32>
    %68 = vector.broadcast %67 : vector<1x128xf32> to vector<8x128xf32>
    %69 = arith.addf %66, %68 : vector<8x128xf32>
    %c0_68 = arith.constant 0 : index
    %c0_69 = arith.constant 0 : index
    %70 = vector.load %arg9[%c0_68, %c0_69] : memref<8x128xf32, #tpu.memory_space<vmem>>, vector<8x128xf32>
    tpu.vector_store %arg9[%c0_68, %c0_69], %69 {strides = array<i32>} : memref<8x128xf32, #tpu.memory_space<vmem>>, vector<8x128xf32>,
    return
  }
  func.func @transform_0(%arg0: i32) -> (i32, i32, i32) {
    %c0_i32 = arith.constant 0 : i32
    %c0_i32_0 = arith.constant 0 : i32
    %c0_i32_1 = arith.constant 0 : i32
    return %arg0, %c0_i32, %c0_i32_0 : i32, i32, i32
  }
  func.func @transform_1(%arg0: i32) -> (i32, i32, i32) {
    %c0_i32 = arith.constant 0 : i32
    %c0_i32_0 = arith.constant 0 : i32
    %c0_i32_1 = arith.constant 0 : i32
    %c0_i32_2 = arith.constant 0 : i32
    return %c0_i32, %c0_i32_0, %c0_i32_1 : i32, i32, i32
  }
  func.func @transform_2(%arg0: i32) -> (i32, i32) {
    %c0_i32 = arith.constant 0 : i32
    %c0_i32_0 = arith.constant 0 : i32
    %c0_i32_1 = arith.constant 0 : i32
    return %c0_i32, %c0_i32_0 : i32, i32
  }
  func.func @transform_3(%arg0: i32) -> (i32, i32, i32) {
    %c0_i32 = arith.constant 0 : i32
    %c0_i32_0 = arith.constant 0 : i32
    %c0_i32_1 = arith.constant 0 : i32
    %c0_i32_2 = arith.constant 0 : i32
    return %c0_i32, %c0_i32_0, %c0_i32_1 : i32, i32, i32
  }
  func.func @transform_4(%arg0: i32) -> (i32, i32) {
    %c0_i32 = arith.constant 0 : i32
    %c0_i32_0 = arith.constant 0 : i32
    %c0_i32_1 = arith.constant 0 : i32
    return %c0_i32, %c0_i32_0 : i32, i32
  }
  func.func @transform_5(%arg0: i32) -> (i32, i32) {
    %c0_i32 = arith.constant 0 : i32
    %c0_i32_0 = arith.constant 0 : i32
    %c0_i32_1 = arith.constant 0 : i32
    return %c0_i32, %c0_i32_0 : i32, i32
  }
  func.func @transform_6(%arg0: i32) -> (i32, i32) {
    %c0_i32 = arith.constant 0 : i32
    %c0_i32_0 = arith.constant 0 : i32
    %c0_i32_1 = arith.constant 0 : i32
    return %c0_i32, %c0_i32_0 : i32, i32
  }
  func.func @transform_7(%arg0: i32) -> (i32, i32) {
    %c0_i32 = arith.constant 0 : i32
    %c0_i32_0 = arith.constant 0 : i32
    %c0_i32_1 = arith.constant 0 : i32
    return %c0_i32, %c0_i32_0 : i32, i32
  }
  func.func @transform_8(%arg0: i32) -> (i32, i32) {
    %c0_i32 = arith.constant 0 : i32
    %c0_i32_0 = arith.constant 0 : i32
    return %arg0, %c0_i32 : i32, i32
  }
}

</mosaic_0001>

<llo_original>
// kernel: volume_render_res_block.1
$region0: #{volume_render_res_block.1}
  #allocation0 [shape = 'u32[]', space=smem, size = 0x4, offset = 0x4, fixed_abs, tag = 'smem constant byte address 0x4 - core index']
  #allocation1 [shape = 'u32[144,128]{1,0:T(1,128)}', space=vmem, size = 0x12000, scoped, tag = 'internal scratch']
  #allocation2 [shape = 'f32[1,18,256]{2,1,0:T(8,128)}', space=vmem, size = 0x6000, scoped, tag = 'scratch operand']
  %s0 = inlined_call_operand.vmem [shape: f32[2,18,128], index: 0, kind: input, shape index: {}]
  %s1 = inlined_call_operand.vmem [shape: f32[3,128,256], index: 1, kind: input, shape index: {}]
  %s2 = inlined_call_operand.vmem [shape: f32[16,256], index: 2, kind: input, shape index: {}]
  %s3 = inlined_call_operand.hbm [shape: f32[3,256,256], index: 3, kind: input, shape index: {}]
  %s4 = inlined_call_operand.vmem [shape: f32[16,256], index: 4, kind: input, shape index: {}]
  %s5 = inlined_call_operand.vmem [shape: f32[256,128], index: 5, kind: input, shape index: {}]
  %s6 = inlined_call_operand.vmem [shape: f32[128,128], index: 6, kind: input, shape index: {}]
  %s7 = inlined_call_operand.vmem [shape: f32[1,128], index: 7, kind: input, shape index: {}]
  %s8 = inlined_call_operand.vmem [shape: f32[16,128], index: 8, kind: output, shape index: {}]
  %s9 = sld [smem:[#allocation0]]
  $region69: #{volume_render_res_block.1} parent=0
    _
  %s11 = ssub.s32 1, %s9
  %s12 = scalar_select 0, %s11, %s9
  $region1: #{volume_render_res_block.1} parent=0
    #allocation3 [shape = 'u8[786432]{0}', space=vmem, size = 0xc0000, scoped, tag = 'input window, operand 3, single buffered']
    #allocation4 [shape = 's32[2]{0}', space=sflag, size = 0x8, scoped, tag = 'scoped memory for volume_render_res_block.1']
    %13 = vsyncpa [#allocation4], 0
    loop: start=0, step=1, limit=4
    $region2: #{volume_render_res_block.1} parent=1 // loop_pre_header
      _
    $region3: #{volume_render_res_block.1} parent=1 // loop_header
      %s15 = sphi 0, %s19
      %p16 = scmp.ge.s32.totalorder %s15, 4
      %s25 = sphi 0, %s27
      %s28 = sphi 0, %s25
      %s29 = sphi 0, %s28
      %s45 = sphi 0, %s29
      %s49 = sphi 0, %s49
      %s51 = sphi 0, %s49
      %s52 = sphi 0, %s51
      %s66 = sphi 0, %s52
      %s70 = sphi 0, %s70
      %s72 = sphi 0, %s70
      %s73 = sphi 0, %s72
      %s87 = sphi 0, %s73
      %s91 = sphi 0, %s91
      %s93 = sphi 0, %s91
      %s94 = sphi 0, %s93
      %s108 = sphi 0, %s94
      %s112 = sphi 0, %s112
      %s114 = sphi 0, %s112
      %s115 = sphi 0, %s114
      %s129 = sphi 0, %s115
      %s133 = sphi 0, %s133
      %s135 = sphi 0, %s133
      %s136 = sphi 0, %s135
      %s150 = sphi 0, %s136
      %s154 = sphi 0, %s154
      %s156 = sphi 0, %s154
      %s157 = sphi 0, %s156
      %s171 = sphi 0, %s157
      %s175 = sphi 0, %s175
      %s177 = sphi 0, %s175
      %s178 = sphi 0, %s177
      %s192 = sphi 0, %s178
      %s198 = sphi 0, %s200
      %s201 = sphi 0, %s198
      %s202 = sphi 0, %s201
      %s218 = sphi 0, %s202
    $region4: #{volume_render_res_block.1} parent=1 // loop_header_branch
      %18 = sbr.rel (%p16) target = $region8
    $region5: #{volume_render_res_block.1} parent=1 // loop_body
      %s20 = ssub.s32 %s15, 1
      %s21 = ssub.s32 %s15, 2
      %s22 = sadd.s32 %s15, 1
      %s23 = ssub.s32 %s15, %s22
      %p24 = scmp.eq.s32.totalorder %s23, 0
      %s26 = sadd.s32 %s25, 1
      %s27 = scalar_select %p24, %s25, %s26
      %p30 = pneg %p24
      %p31 = scmp.eq.s32.totalorder %s15, 1
      %p32 = por %p30, %p31
      %p33 = scmp.ne.s32.totalorder %s25, %s28
      %p34 = scmp.eq.s32.totalorder %s15, 0
      %p35 = por %p33, %p34
      %p36 = scmp.ne.s32.totalorder %s25, %s28
      %p37 = scmp.eq.s32.totalorder %s20, 1
      %p38 = por %p36, %p37
      %p39 = scmp.ne.s32.totalorder %s28, %s29
      %p40 = scmp.eq.s32.totalorder %s20, 0
      %p41 = por %p39, %p40
      %p42 = scmp.ne.s32.totalorder %s28, %s29
      %p43 = scmp.eq.s32.totalorder %s21, 1
      %p44 = por %p42, %p43
      %p46 = scmp.ne.s32.totalorder %s29, %s45
      %p47 = scmp.eq.s32.totalorder %s21, 0
      %p48 = por %p46, %p47
      %s50 = sadd.s32 %s49, 1
      %p53 = scmp.eq.s32.totalorder %s15, 1
      %p54 = scmp.ne.s32.totalorder %s49, %s51
      %p55 = scmp.eq.s32.totalorder %s15, 0
      %p56 = por %p54, %p55
      %p57 = scmp.ne.s32.totalorder %s49, %s51
      %p58 = scmp.eq.s32.totalorder %s20, 1
      %p59 = por %p57, %p58
      %p60 = scmp.ne.s32.totalorder %s51, %s52
      %p61 = scmp.eq.s32.totalorder %s20, 0
      %p62 = por %p60, %p61
      %p63 = scmp.ne.s32.totalorder %s51, %s52
      %p64 = scmp.eq.s32.totalorder %s21, 1
      %p65 = por %p63, %p64
      %p67 = scmp.ne.s32.totalorder %s52, %s66
      %p68 = scmp.eq.s32.totalorder %s21, 0
      %p69 = por %p67, %p68
      %s71 = sadd.s32 %s70, 1
      %p74 = scmp.eq.s32.totalorder %s15, 1
      %p75 = scmp.ne.s32.totalorder %s70, %s72
      %p76 = scmp.eq.s32.totalorder %s15, 0
      %p77 = por %p75, %p76
      %p78 = scmp.ne.s32.totalorder %s70, %s72
      %p79 = scmp.eq.s32.totalorder %s20, 1
      %p80 = por %p78, %p79
      %p81 = scmp.ne.s32.totalorder %s72, %s73
      %p82 = scmp.eq.s32.totalorder %s20, 0
      %p83 = por %p81, %p82
      %p84 = scmp.ne.s32.totalorder %s72, %s73
      %p85 = scmp.eq.s32.totalorder %s21, 1
      %p86 = por %p84, %p85
      %p88 = scmp.ne.s32.totalorder %s73, %s87
      %p89 = scmp.eq.s32.totalorder %s21, 0
      %p90 = por %p88, %p89
      %s92 = sadd.s32 %s91, 1
      %p95 = scmp.eq.s32.totalorder %s15, 1
      %p96 = scmp.ne.s32.totalorder %s91, %s93
      %p97 = scmp.eq.s32.totalorder %s15, 0
      %p98 = por %p96, %p97
      %p99 = scmp.ne.s32.totalorder %s91, %s93
      %p100 = scmp.eq.s32.totalorder %s20, 1
      %p101 = por %p99, %p100
      %p102 = scmp.ne.s32.totalorder %s93, %s94
      %p103 = scmp.eq.s32.totalorder %s20, 0
      %p104 = por %p102, %p103
      %p105 = scmp.ne.s32.totalorder %s93, %s94
      %p106 = scmp.eq.s32.totalorder %s21, 1
      %p107 = por %p105, %p106
      %p109 = scmp.ne.s32.totalorder %s94, %s108
      %p110 = scmp.eq.s32.totalorder %s21, 0
      %p111 = por %p109, %p110
      %s113 = sadd.s32 %s112, 1
      %p116 = scmp.eq.s32.totalorder %s15, 1
      %p117 = scmp.ne.s32.totalorder %s112, %s114
      %p118 = scmp.eq.s32.totalorder %s15, 0
      %p119 = por %p117, %p118
      %p120 = scmp.ne.s32.totalorder %s112, %s114
      %p121 = scmp.eq.s32.totalorder %s20, 1
      %p122 = por %p120, %p121
      %p123 = scmp.ne.s32.totalorder %s114, %s115
      %p124 = scmp.eq.s32.totalorder %s20, 0
      %p125 = por %p123, %p124
      %p126 = scmp.ne.s32.totalorder %s114, %s115
      %p127 = scmp.eq.s32.totalorder %s21, 1
      %p128 = por %p126, %p127
      %p130 = scmp.ne.s32.totalorder %s115, %s129
      %p131 = scmp.eq.s32.totalorder %s21, 0
      %p132 = por %p130, %p131
      %s134 = sadd.s32 %s133, 1
      %p137 = scmp.eq.s32.totalorder %s15, 1
      %p138 = scmp.ne.s32.totalorder %s133, %s135
      %p139 = scmp.eq.s32.totalorder %s15, 0
      %p140 = por %p138, %p139
      %p141 = scmp.ne.s32.totalorder %s133, %s135
      %p142 = scmp.eq.s32.totalorder %s20, 1
      %p143 = por %p141, %p142
      %p144 = scmp.ne.s32.totalorder %s135, %s136
      %p145 = scmp.eq.s32.totalorder %s20, 0
      %p146 = por %p144, %p145
      %p147 = scmp.ne.s32.totalorder %s135, %s136
      %p148 = scmp.eq.s32.totalorder %s21, 1
      %p149 = por %p147, %p148
      %p151 = scmp.ne.s32.totalorder %s136, %s150
      %p152 = scmp.eq.s32.totalorder %s21, 0
      %p153 = por %p151, %p152
      %s155 = sadd.s32 %s154, 1
      %p158 = scmp.eq.s32.totalorder %s15, 1
      %p159 = scmp.ne.s32.totalorder %s154, %s156
      %p160 = scmp.eq.s32.totalorder %s15, 0
      %p161 = por %p159, %p160
      %p162 = scmp.ne.s32.totalorder %s154, %s156
      %p163 = scmp.eq.s32.totalorder %s20, 1
      %p164 = por %p162, %p163
      %p165 = scmp.ne.s32.totalorder %s156, %s157
      %p166 = scmp.eq.s32.totalorder %s20, 0
      %p167 = por %p165, %p166
      %p168 = scmp.ne.s32.totalorder %s156, %s157
      %p169 = scmp.eq.s32.totalorder %s21, 1
      %p170 = por %p168, %p169
      %p172 = scmp.ne.s32.totalorder %s157, %s171
      %p173 = scmp.eq.s32.totalorder %s21, 0
      %p174 = por %p172, %p173
      %s176 = sadd.s32 %s175, 1
      %p179 = scmp.eq.s32.totalorder %s15, 1
      %p180 = scmp.ne.s32.totalorder %s175, %s177
      %p181 = scmp.eq.s32.totalorder %s15, 0
      %p182 = por %p180, %p181
      %p183 = scmp.ne.s32.totalorder %s175, %s177
      %p184 = scmp.eq.s32.totalorder %s20, 1
      %p185 = por %p183, %p184
      %p186 = scmp.ne.s32.totalorder %s177, %s178
      %p187 = scmp.eq.s32.totalorder %s20, 0
      %p188 = por %p186, %p187
      %p189 = scmp.ne.s32.totalorder %s177, %s178
      %p190 = scmp.eq.s32.totalorder %s21, 1
      %p191 = por %p189, %p190
      %p193 = scmp.ne.s32.totalorder %s178, %s192
      %p194 = scmp.eq.s32.totalorder %s21, 0
      %p195 = por %p193, %p194
      %s196 = ssub.s32 %s15, %s22
      %p197 = scmp.eq.s32.totalorder %s196, 0
      %s199 = sadd.s32 %s198, 1
      %s200 = scalar_select %p197, %s198, %s199
      %p203 = pneg %p197
      %p204 = scmp.eq.s32.totalorder %s15, 1
      %p205 = por %p203, %p204
      %p206 = scmp.ne.s32.totalorder %s198, %s201
      %p207 = scmp.eq.s32.totalorder %s15, 0
      %p208 = por %p206, %p207
      %p209 = scmp.ne.s32.totalorder %s198, %s201
      %p210 = scmp.eq.s32.totalorder %s20, 1
      %p211 = por %p209, %p210
      %p212 = scmp.ne.s32.totalorder %s201, %s202
      %p213 = scmp.eq.s32.totalorder %s20, 0
      %p214 = por %p212, %p213
      %p215 = scmp.ne.s32.totalorder %s201, %s202
      %p216 = scmp.eq.s32.totalorder %s21, 1
      %p217 = por %p215, %p216
      %p219 = scmp.ne.s32.totalorder %s202, %s218
      %p220 = scmp.eq.s32.totalorder %s21, 0
      %p221 = por %p219, %p220
      %p222 = scmp.le.s32.totalorder 1, %s15
      %p223 = scmp.lt.s32.totalorder %s15, 3
      %p224 = pnand %p222, %p223
      %p225 = pneg %p224
      // Predicated region
      $region9: #{volume_render_res_block.1} parent=5 // pred_check
        _
      $region10: #{volume_render_res_block.1} parent=5 // pred_check_branch
        %227 = sbr.rel (%p224) target = $region12
      $region11: #{volume_render_res_block.1} parent=5 // pred_region
        %s228 = ssub.s32 %s15, 1
        // Predicated region
        $region13: #{volume_render_res_block.1} parent=11 // pred_check
          %p229 = pneg %p62
        $region14: #{volume_render_res_block.1} parent=11 // pred_check_branch
          %231 = sbr.rel (%p229) target = $region16
        $region15: #{volume_render_res_block.1} parent=11 // pred_region
          _
        $region16: #{volume_render_res_block.1} parent=11 // pred_fallthru
          _
        // Predicated region
        $region17: #{volume_render_res_block.1} parent=11 // pred_check
          %p232 = pneg %p83
        $region18: #{volume_render_res_block.1} parent=11 // pred_check_branch
          %234 = sbr.rel (%p232) target = $region20
        $region19: #{volume_render_res_block.1} parent=11 // pred_region
          _
        $region20: #{volume_render_res_block.1} parent=11 // pred_fallthru
          _
        // Predicated region
        $region21: #{volume_render_res_block.1} parent=11 // pred_check
          %p235 = pneg %p104
        $region22: #{volume_render_res_block.1} parent=11 // pred_check_branch
          %237 = sbr.rel (%p235) target = $region24
        $region23: #{volume_render_res_block.1} parent=11 // pred_region
          %s239 = ssub.s32 24576, 24576
          %240 = vsyncadd [#allocation4], %s239
          %s241 = sshll.u32 [#allocation3], 4
          %s242 = int_to_ptr.vmem [resolvable:$true] %s241
          %247 = dma.hbm_to_vmem [thread:$0]  %s3, 24576, %s242, [#allocation4], 256, 256, 16
        $region24: #{volume_render_res_block.1} parent=11 // pred_fallthru
          _
        // Predicated region
        $region25: #{volume_render_res_block.1} parent=11 // pred_check
          %p248 = pneg %p125
        $region26: #{volume_render_res_block.1} parent=11 // pred_check_branch
          %250 = sbr.rel (%p248) target = $region28
        $region27: #{volume_render_res_block.1} parent=11 // pred_region
          _
        $region28: #{volume_render_res_block.1} parent=11 // pred_fallthru
          _
        // Predicated region
        $region29: #{volume_render_res_block.1} parent=11 // pred_check
          %p251 = pneg %p146
        $region30: #{volume_render_res_block.1} parent=11 // pred_check_branch
          %253 = sbr.rel (%p251) target = $region32
        $region31: #{volume_render_res_block.1} parent=11 // pred_region
          _
        $region32: #{volume_render_res_block.1} parent=11 // pred_fallthru
          _
        // Predicated region
        $region33: #{volume_render_res_block.1} parent=11 // pred_check
          %p254 = pneg %p167
        $region34: #{volume_render_res_block.1} parent=11 // pred_check_branch
          %256 = sbr.rel (%p254) target = $region36
        $region35: #{volume_render_res_block.1} parent=11 // pred_region
          _
        $region36: #{volume_render_res_block.1} parent=11 // pred_fallthru
          _
        // Predicated region
        $region37: #{volume_render_res_block.1} parent=11 // pred_check
          %p257 = pneg %p188
        $region38: #{volume_render_res_block.1} parent=11 // pred_check_branch
          %259 = sbr.rel (%p257) target = $region40
        $region39: #{volume_render_res_block.1} parent=11 // pred_region
          _
        $region40: #{volume_render_res_block.1} parent=11 // pred_fallthru
          _
      $region12: #{volume_render_res_block.1} parent=5 // pred_fallthru
        _
      %p260 = scmp.lt.s32.totalorder %s15, 2
      // Predicated region
      $region41: #{volume_render_res_block.1} parent=5 // pred_check
        %p261 = pneg %p260
      $region42: #{volume_render_res_block.1} parent=5 // pred_check_branch
        %263 = sbr.rel (%p261) target = $region44
      $region43: #{volume_render_res_block.1} parent=5 // pred_region
        // Predicated region
        $region45: #{volume_render_res_block.1} parent=43 // pred_check
          %p264 = pneg %p35
        $region46: #{volume_render_res_block.1} parent=43 // pred_check_branch
          %266 = sbr.rel (%p264) target = $region48
        $region47: #{volume_render_res_block.1} parent=43 // pred_region
          %p267 = scmp.lt.s32.totalorder %s15, 1
          %s268 = scalar_select %p267, %s15, 1
          %s269 = smul.addr %s268, 3
          %s270 = smul.addr %s269, 8
          %s271 = scalar_lea.vmem %s0, %s270
        $region48: #{volume_render_res_block.1} parent=43 // pred_fallthru
          _
      $region44: #{volume_render_res_block.1} parent=5 // pred_fallthru
        _
      %p272 = scmp.le.s32.totalorder 1, %s15
      %p273 = scmp.lt.s32.totalorder %s15, 3
      %p274 = pnand %p272, %p273
      %p275 = pneg %p274
      // Predicated region
      $region49: #{volume_render_res_block.1} parent=5 // pred_check
        _
      $region50: #{volume_render_res_block.1} parent=5 // pred_check_branch
        %277 = sbr.rel (%p274) target = $region52
      $region51: #{volume_render_res_block.1} parent=5 // pred_region
        %s278 = ssub.s32 %s15, 1
        // Predicated region
        $region53: #{volume_render_res_block.1} parent=51 // pred_check
          %p279 = pneg %p104
        $region54: #{volume_render_res_block.1} parent=51 // pred_check_branch
          %281 = sbr.rel (%p279) target = $region56
        $region55: #{volume_render_res_block.1} parent=51 // pred_region
          %282 = dma.done [#allocation4], 24576
        $region56: #{volume_render_res_block.1} parent=51 // pred_fallthru
          _
        %p283 = scmp.lt.s32.totalorder %s20, 1
        %s284 = scalar_select %p283, %s20, 1
        %s285 = smul.addr %s284, 3
        %s286 = smul.addr %s285, 8
        %s287 = scalar_lea.vmem %s0, %s286
        %p288 = pneg %p41
        %p289 = pneg %p38
        %p290 = pneg %p62
        %p291 = pneg %p59
        %p292 = pneg %p83
        %p293 = pneg %p80
        %p294 = pneg %p104
        %p295 = pneg %p101
        %p296 = pneg %p125
        %p297 = pneg %p122
        %p298 = pneg %p146
        %p299 = pneg %p143
        %p300 = pneg %p167
        %p301 = pneg %p164
        %p302 = pneg %p188
        %p303 = pneg %p185
        %p304 = pneg %p214
        %p305 = pneg %p211
        %p306 = scmp.lt.s32.totalorder %s20, 1
        %s307 = scalar_select %p306, %s20, 1
        %s308 = smul.addr %s307, 8
        %s309 = scalar_lea.vmem %s8, %s308
        %p310 = scmp.lt.s32.totalorder %s20, 1
        %s311 = scalar_select %p310, %s20, 1
        %s312 = smul.addr %s311, 3
        %s313 = smul.addr %s312, 8
        %s314 = scalar_lea.vmem %s0, %s313
        %p315 = scmp.lt.s32.totalorder %s20, 1
        %s316 = scalar_select %p315, %s20, 1
        %s317 = smul.addr %s316, 8
        %s318 = scalar_lea.vmem %s8, %s317
        %v319 = vld [vmem:[%s314] sm:$0xff]
        %v320 = vld [vmem:[%s314 + $0x8] sm:$0xff]
        %v321 = vld [vmem:[%s1] sm:$0xff]
        %v322 = vld [vmem:[%s1 + $0x8] sm:$0xff]
        %v323 = vld [vmem:[%s1 + $0x10] sm:$0xff]
        %v324 = vld [vmem:[%s1 + $0x18] sm:$0xff]
        %v325 = vld [vmem:[%s1 + $0x20] sm:$0xff]
        %v326 = vld [vmem:[%s1 + $0x28] sm:$0xff]
        %v327 = vld [vmem:[%s1 + $0x30] sm:$0xff]
        %v328 = vld [vmem:[%s1 + $0x38] sm:$0xff]
        %v329 = vld [vmem:[%s1 + $0x40] sm:$0xff]
        %v330 = vld [vmem:[%s1 + $0x48] sm:$0xff]
        %v331 = vld [vmem:[%s1 + $0x50] sm:$0xff]
        %v332 = vld [vmem:[%s1 + $0x58] sm:$0xff]
        %v333 = vld [vmem:[%s1 + $0x60] sm:$0xff]
        %v334 = vld [vmem:[%s1 + $0x68] sm:$0xff]
        %v335 = vld [vmem:[%s1 + $0x70] sm:$0xff]
        %v336 = vld [vmem:[%s1 + $0x78] sm:$0xff]
        %v337 = vld [vmem:[%s1 + $0x80] sm:$0xff]
        %v338 = vld [vmem:[%s1 + $0x88] sm:$0xff]
        %v339 = vld [vmem:[%s1 + $0x90] sm:$0xff]
        %v340 = vld [vmem:[%s1 + $0x98] sm:$0xff]
        %v341 = vld [vmem:[%s1 + $0xa0] sm:$0xff]
        %v342 = vld [vmem:[%s1 + $0xa8] sm:$0xff]
        %v343 = vld [vmem:[%s1 + $0xb0] sm:$0xff]
        %v344 = vld [vmem:[%s1 + $0xb8] sm:$0xff]
        %v345 = vld [vmem:[%s1 + $0xc0] sm:$0xff]
        %v346 = vld [vmem:[%s1 + $0xc8] sm:$0xff]
        %v347 = vld [vmem:[%s1 + $0xd0] sm:$0xff]
        %v348 = vld [vmem:[%s1 + $0xd8] sm:$0xff]
        %v349 = vld [vmem:[%s1 + $0xe0] sm:$0xff]
        %v350 = vld [vmem:[%s1 + $0xe8] sm:$0xff]
        %v351 = vld [vmem:[%s1 + $0xf0] sm:$0xff]
        %v352 = vld [vmem:[%s1 + $0xf8] sm:$0xff]
        %v353 = vld [vmem:[%s314 + $0x1] sm:$0xff]
        %v354 = vld [vmem:[%s314 + $0x9] sm:$0xff]
        %s355 = scalar_lea.vmem %s1, 256
        %v356 = vld [vmem:[%s355] sm:$0xff]
        %v357 = vld [vmem:[%s355 + $0x8] sm:$0xff]
        %v358 = vld [vmem:[%s355 + $0x10] sm:$0xff]
        %v359 = vld [vmem:[%s355 + $0x18] sm:$0xff]
        %v360 = vld [vmem:[%s355 + $0x20] sm:$0xff]
        %v361 = vld [vmem:[%s355 + $0x28] sm:$0xff]
        %v362 = vld [vmem:[%s355 + $0x30] sm:$0xff]
        %v363 = vld [vmem:[%s355 + $0x38] sm:$0xff]
        %v364 = vld [vmem:[%s355 + $0x40] sm:$0xff]
        %v365 = vld [vmem:[%s355 + $0x48] sm:$0xff]
        %v366 = vld [vmem:[%s355 + $0x50] sm:$0xff]
        %v367 = vld [vmem:[%s355 + $0x58] sm:$0xff]
        %v368 = vld [vmem:[%s355 + $0x60] sm:$0xff]
        %v369 = vld [vmem:[%s355 + $0x68] sm:$0xff]
        %v370 = vld [vmem:[%s355 + $0x70] sm:$0xff]
        %v371 = vld [vmem:[%s355 + $0x78] sm:$0xff]
        %v372 = vld [vmem:[%s355 + $0x80] sm:$0xff]
        %v373 = vld [vmem:[%s355 + $0x88] sm:$0xff]
        %v374 = vld [vmem:[%s355 + $0x90] sm:$0xff]
        %v375 = vld [vmem:[%s355 + $0x98] sm:$0xff]
        %v376 = vld [vmem:[%s355 + $0xa0] sm:$0xff]
        %v377 = vld [vmem:[%s355 + $0xa8] sm:$0xff]
        %v378 = vld [vmem:[%s355 + $0xb0] sm:$0xff]
        %v379 = vld [vmem:[%s355 + $0xb8] sm:$0xff]
        %v380 = vld [vmem:[%s355 + $0xc0] sm:$0xff]
        %v381 = vld [vmem:[%s355 + $0xc8] sm:$0xff]
        %v382 = vld [vmem:[%s355 + $0xd0] sm:$0xff]
        %v383 = vld [vmem:[%s355 + $0xd8] sm:$0xff]
        %v384 = vld [vmem:[%s355 + $0xe0] sm:$0xff]
        %v385 = vld [vmem:[%s355 + $0xe8] sm:$0xff]
        %v386 = vld [vmem:[%s355 + $0xf0] sm:$0xff]
        %v387 = vld [vmem:[%s355 + $0xf8] sm:$0xff]
        %388 = vmatprep.subr.mxu0 %v387
        %389 = vmatpush1.msra.mxu0 %v386
        %390 = vmatprep.subr.mxu0 %v385
        %391 = vmatpush1.msra.mxu0 %v384
        %392 = vmatprep.subr.mxu0 %v383
        %393 = vmatpush1.msra.mxu0 %v382
        %394 = vmatprep.subr.mxu0 %v381
        %395 = vmatpush1.msra.mxu0 %v380
        %396 = vmatprep.subr.mxu0 %v379
        %397 = vmatpush1.msra.mxu0 %v378
        %398 = vmatprep.subr.mxu0 %v377
        %399 = vmatpush1.msra.mxu0 %v376
        %400 = vmatprep.subr.mxu0 %v375
        %401 = vmatpush1.msra.mxu0 %v374
        %402 = vmatprep.subr.mxu0 %v373
        %403 = vmatpush1.msra.mxu0 %v372
        %404 = vmatprep.subr.mxu0 %v371
        %405 = vmatpush1.msra.mxu0 %v370
        %406 = vmatprep.subr.mxu0 %v369
        %407 = vmatpush1.msra.mxu0 %v368
        %408 = vmatprep.subr.mxu0 %v367
        %409 = vmatpush1.msra.mxu0 %v366
        %410 = vmatprep.subr.mxu0 %v365
        %411 = vmatpush1.msra.mxu0 %v364
        %412 = vmatprep.subr.mxu0 %v363
        %413 = vmatpush1.msra.mxu0 %v362
        %414 = vmatprep.subr.mxu0 %v361
        %415 = vmatpush1.msra.mxu0 %v360
        %416 = vmatprep.subr.mxu0 %v359
        %417 = vmatpush1.msra.mxu0 %v358
        %418 = vmatprep.subr.mxu0 %v357
        %419 = vmatpush1.msra.mxu0 %v356
        %420 = vmatprep.subr.mxu0 0.0
        %421 = vmatpush2.msra.mxu0 0.0
        %422 = vmatprep.subr.mxu0 0.0
        %423 = vmatpush2.msra.mxu0 0.0
        %424 = vmatprep.subr.mxu0 0.0
        %425 = vmatpush2.msra.mxu0 0.0
        %426 = vmatprep.subr.mxu0 0.0
        %427 = vmatpush2.msra.mxu0 0.0
        %428 = vmatprep.subr.mxu0 0.0
        %429 = vmatpush2.msra.mxu0 0.0
        %430 = vmatprep.subr.mxu0 0.0
        %431 = vmatpush2.msra.mxu0 0.0
        %432 = vmatprep.subr.mxu0 0.0
        %433 = vmatpush2.msra.mxu0 0.0
        %434 = vmatprep.subr.mxu0 0.0
        %435 = vmatpush2.msra.mxu0 0.0
        %436 = vmatprep.subr.mxu0 0.0
        %437 = vmatpush2.msra.mxu0 0.0
        %438 = vmatprep.subr.mxu0 0.0
        %439 = vmatpush2.msra.mxu0 0.0
        %440 = vmatprep.subr.mxu0 0.0
        %441 = vmatpush2.msra.mxu0 0.0
        %442 = vmatprep.subr.mxu0 0.0
        %443 = vmatpush2.msra.mxu0 0.0
        %444 = vmatprep.subr.mxu0 0.0
        %445 = vmatpush2.msra.mxu0 0.0
        %446 = vmatprep.subr.mxu0 0.0
        %447 = vmatpush2.msra.mxu0 0.0
        %448 = vmatprep.subr.mxu0 0.0
        %449 = vmatpush2.msra.mxu0 0.0
        %450 = vmatprep.subr.mxu0 0.0
        %451 = vmatpush2.msra.mxu0 0.0
        %452 = vmatprep.mubr.f32.mxu0 0.0
        %453 = vmatmul.mubr.f32.gmra.mxu0 %v353
        %v454 = vpop.f32.mrf.mxu0
        %v455 = vadd.f32 0.0, %v454
        %v456 = vpop.f32.mrf.mxu0
        %v457 = vadd.f32 0.0, %v456
        %458 = vmatprep.mubr.f32.mxu0 0.0
        %459 = vmatmul.mubr.f32.gmra.mxu0 %v354
        %v460 = vpop.f32.mrf.mxu0
        %v461 = vadd.f32 0.0, %v460
        %v462 = vpop.f32.mrf.mxu0
        %v463 = vadd.f32 0.0, %v462
        %464 = vdwg.mxu0
        %465 = vmatprep.subr.mxu0 %v352
        %466 = vmatpush1.msra.mxu0 %v351
        %467 = vmatprep.subr.mxu0 %v350
        %468 = vmatpush1.msra.mxu0 %v349
        %469 = vmatprep.subr.mxu0 %v348
        %470 = vmatpush1.msra.mxu0 %v347
        %471 = vmatprep.subr.mxu0 %v346
        %472 = vmatpush1.msra.mxu0 %v345
        %473 = vmatprep.subr.mxu0 %v344
        %474 = vmatpush1.msra.mxu0 %v343
        %475 = vmatprep.subr.mxu0 %v342
        %476 = vmatpush1.msra.mxu0 %v341
        %477 = vmatprep.subr.mxu0 %v340
        %478 = vmatpush1.msra.mxu0 %v339
        %479 = vmatprep.subr.mxu0 %v338
        %480 = vmatpush1.msra.mxu0 %v337
        %481 = vmatprep.subr.mxu0 %v336
        %482 = vmatpush1.msra.mxu0 %v335
        %483 = vmatprep.subr.mxu0 %v334
        %484 = vmatpush1.msra.mxu0 %v333
        %485 = vmatprep.subr.mxu0 %v332
        %486 = vmatpush1.msra.mxu0 %v331
        %487 = vmatprep.subr.mxu0 %v330
        %488 = vmatpush1.msra.mxu0 %v329
        %489 = vmatprep.subr.mxu0 %v328
        %490 = vmatpush1.msra.mxu0 %v327
        %491 = vmatprep.subr.mxu0 %v326
        %492 = vmatpush1.msra.mxu0 %v325
        %493 = vmatprep.subr.mxu0 %v324
        %494 = vmatpush1.msra.mxu0 %v323
        %495 = vmatprep.subr.mxu0 %v322
        %496 = vmatpush1.msra.mxu0 %v321
        %497 = vmatprep.subr.mxu0 0.0
        %498 = vmatpush2.msra.mxu0 0.0
        %499 = vmatprep.subr.mxu0 0.0
        %500 = vmatpush2.msra.mxu0 0.0
        %501 = vmatprep.subr.mxu0 0.0
        %502 = vmatpush2.msra.mxu0 0.0
        %503 = vmatprep.subr.mxu0 0.0
        %504 = vmatpush2.msra.mxu0 0.0
        %505 = vmatprep.subr.mxu0 0.0
        %506 = vmatpush2.msra.mxu0 0.0
        %507 = vmatprep.subr.mxu0 0.0
        %508 = vmatpush2.msra.mxu0 0.0
        %509 = vmatprep.subr.mxu0 0.0
        %510 = vmatpush2.msra.mxu0 0.0
        %511 = vmatprep.subr.mxu0 0.0
        %512 = vmatpush2.msra.mxu0 0.0
        %513 = vmatprep.subr.mxu0 0.0
        %514 = vmatpush2.msra.mxu0 0.0
        %515 = vmatprep.subr.mxu0 0.0
        %516 = vmatpush2.msra.mxu0 0.0
        %517 = vmatprep.subr.mxu0 0.0
        %518 = vmatpush2.msra.mxu0 0.0
        %519 = vmatprep.subr.mxu0 0.0
        %520 = vmatpush2.msra.mxu0 0.0
        %521 = vmatprep.subr.mxu0 0.0
        %522 = vmatpush2.msra.mxu0 0.0
        %523 = vmatprep.subr.mxu0 0.0
        %524 = vmatpush2.msra.mxu0 0.0
        %525 = vmatprep.subr.mxu0 0.0
        %526 = vmatpush2.msra.mxu0 0.0
        %527 = vmatprep.subr.mxu0 0.0
        %528 = vmatpush2.msra.mxu0 0.0
        %529 = vmatprep.mubr.f32.mxu0 0.0
        %530 = vmatmul.mubr.f32.gmra.mxu0 %v319
        %v531 = vpop.f32.mrf.mxu0
        %v532 = vadd.f32 %v455, %v531
        %v533 = vpop.f32.mrf.mxu0
        %v534 = vadd.f32 %v457, %v533
        %535 = vmatprep.mubr.f32.mxu0 0.0
        %536 = vmatmul.mubr.f32.gmra.mxu0 %v320
        %v537 = vpop.f32.mrf.mxu0
        %v538 = vadd.f32 %v461, %v537
        %v539 = vpop.f32.mrf.mxu0
        %v540 = vadd.f32 %v463, %v539
        %541 = vdwg.mxu0
        %v542 = vld [vmem:[%s314 + $0x2] sm:$0xff]
        %v543 = vld [vmem:[%s314 + $0xa] sm:$0xff]
        %s544 = scalar_lea.vmem %s1, 512
        %v545 = vld [vmem:[%s544] sm:$0xff]
        %v546 = vld [vmem:[%s544 + $0x8] sm:$0xff]
        %v547 = vld [vmem:[%s544 + $0x10] sm:$0xff]
        %v548 = vld [vmem:[%s544 + $0x18] sm:$0xff]
        %v549 = vld [vmem:[%s544 + $0x20] sm:$0xff]
        %v550 = vld [vmem:[%s544 + $0x28] sm:$0xff]
        %v551 = vld [vmem:[%s544 + $0x30] sm:$0xff]
        %v552 = vld [vmem:[%s544 + $0x38] sm:$0xff]
        %v553 = vld [vmem:[%s544 + $0x40] sm:$0xff]
        %v554 = vld [vmem:[%s544 + $0x48] sm:$0xff]
        %v555 = vld [vmem:[%s544 + $0x50] sm:$0xff]
        %v556 = vld [vmem:[%s544 + $0x58] sm:$0xff]
        %v557 = vld [vmem:[%s544 + $0x60] sm:$0xff]
        %v558 = vld [vmem:[%s544 + $0x68] sm:$0xff]
        %v559 = vld [vmem:[%s544 + $0x70] sm:$0xff]
        %v560 = vld [vmem:[%s544 + $0x78] sm:$0xff]
        %v561 = vld [vmem:[%s544 + $0x80] sm:$0xff]
        %v562 = vld [vmem:[%s544 + $0x88] sm:$0xff]
        %v563 = vld [vmem:[%s544 + $0x90] sm:$0xff]
        %v564 = vld [vmem:[%s544 + $0x98] sm:$0xff]
        %v565 = vld [vmem:[%s544 + $0xa0] sm:$0xff]
        %v566 = vld [vmem:[%s544 + $0xa8] sm:$0xff]
        %v567 = vld [vmem:[%s544 + $0xb0] sm:$0xff]
        %v568 = vld [vmem:[%s544 + $0xb8] sm:$0xff]
        %v569 = vld [vmem:[%s544 + $0xc0] sm:$0xff]
        %v570 = vld [vmem:[%s544 + $0xc8] sm:$0xff]
        %v571 = vld [vmem:[%s544 + $0xd0] sm:$0xff]
        %v572 = vld [vmem:[%s544 + $0xd8] sm:$0xff]
        %v573 = vld [vmem:[%s544 + $0xe0] sm:$0xff]
        %v574 = vld [vmem:[%s544 + $0xe8] sm:$0xff]
        %v575 = vld [vmem:[%s544 + $0xf0] sm:$0xff]
        %v576 = vld [vmem:[%s544 + $0xf8] sm:$0xff]
        %577 = vmatprep.subr.mxu0 %v576
        %578 = vmatpush1.msra.mxu0 %v575
        %579 = vmatprep.subr.mxu0 %v574
        %580 = vmatpush1.msra.mxu0 %v573
        %581 = vmatprep.subr.mxu0 %v572
        %582 = vmatpush1.msra.mxu0 %v571
        %583 = vmatprep.subr.mxu0 %v570
        %584 = vmatpush1.msra.mxu0 %v569
        %585 = vmatprep.subr.mxu0 %v568
        %586 = vmatpush1.msra.mxu0 %v567
        %587 = vmatprep.subr.mxu0 %v566
        %588 = vmatpush1.msra.mxu0 %v565
        %589 = vmatprep.subr.mxu0 %v564
        %590 = vmatpush1.msra.mxu0 %v563
        %591 = vmatprep.subr.mxu0 %v562
        %592 = vmatpush1.msra.mxu0 %v561
        %593 = vmatprep.subr.mxu0 %v560
        %594 = vmatpush1.msra.mxu0 %v559
        %595 = vmatprep.subr.mxu0 %v558
        %596 = vmatpush1.msra.mxu0 %v557
        %597 = vmatprep.subr.mxu0 %v556
        %598 = vmatpush1.msra.mxu0 %v555
        %599 = vmatprep.subr.mxu0 %v554
        %600 = vmatpush1.msra.mxu0 %v553
        %601 = vmatprep.subr.mxu0 %v552
        %602 = vmatpush1.msra.mxu0 %v551
        %603 = vmatprep.subr.mxu0 %v550
        %604 = vmatpush1.msra.mxu0 %v549
        %605 = vmatprep.subr.mxu0 %v548
        %606 = vmatpush1.msra.mxu0 %v547
        %607 = vmatprep.subr.mxu0 %v546
        %608 = vmatpush1.msra.mxu0 %v545
        %609 = vmatprep.subr.mxu0 0.0
        %610 = vmatpush2.msra.mxu0 0.0
        %611 = vmatprep.subr.mxu0 0.0
        %612 = vmatpush2.msra.mxu0 0.0
        %613 = vmatprep.subr.mxu0 0.0
        %614 = vmatpush2.msra.mxu0 0.0
        %615 = vmatprep.subr.mxu0 0.0
        %616 = vmatpush2.msra.mxu0 0.0
        %617 = vmatprep.subr.mxu0 0.0
        %618 = vmatpush2.msra.mxu0 0.0
        %619 = vmatprep.subr.mxu0 0.0
        %620 = vmatpush2.msra.mxu0 0.0
        %621 = vmatprep.subr.mxu0 0.0
        %622 = vmatpush2.msra.mxu0 0.0
        %623 = vmatprep.subr.mxu0 0.0
        %624 = vmatpush2.msra.mxu0 0.0
        %625 = vmatprep.subr.mxu0 0.0
        %626 = vmatpush2.msra.mxu0 0.0
        %627 = vmatprep.subr.mxu0 0.0
        %628 = vmatpush2.msra.mxu0 0.0
        %629 = vmatprep.subr.mxu0 0.0
        %630 = vmatpush2.msra.mxu0 0.0
        %631 = vmatprep.subr.mxu0 0.0
        %632 = vmatpush2.msra.mxu0 0.0
        %633 = vmatprep.subr.mxu0 0.0
        %634 = vmatpush2.msra.mxu0 0.0
        %635 = vmatprep.subr.mxu0 0.0
        %636 = vmatpush2.msra.mxu0 0.0
        %637 = vmatprep.subr.mxu0 0.0
        %638 = vmatpush2.msra.mxu0 0.0
        %639 = vmatprep.subr.mxu0 0.0
        %640 = vmatpush2.msra.mxu0 0.0
        %641 = vmatprep.mubr.f32.mxu0 0.0
        %642 = vmatmul.mubr.f32.gmra.mxu0 %v542
        %v643 = vpop.f32.mrf.mxu0
        %v644 = vadd.f32 0.0, %v643
        %v645 = vpop.f32.mrf.mxu0
        %v646 = vadd.f32 0.0, %v645
        %647 = vmatprep.mubr.f32.mxu0 0.0
        %648 = vmatmul.mubr.f32.gmra.mxu0 %v543
        %v649 = vpop.f32.mrf.mxu0
        %v650 = vadd.f32 0.0, %v649
        %v651 = vpop.f32.mrf.mxu0
        %v652 = vadd.f32 0.0, %v651
        %653 = vdwg.mxu0
        %v654 = vadd.f32 %v532, %v644
        %v655 = vadd.f32 %v534, %v646
        %v656 = vadd.f32 %v538, %v650
        %v657 = vadd.f32 %v540, %v652
        %v658 = vld [vmem:[%s2] sm:$0xff]
        %v659 = vld [vmem:[%s2 + $0x8] sm:$0xff]
        %v660 = vld [vmem:[%s2 + $0x10] sm:$0xff]
        %v661 = vld [vmem:[%s2 + $0x18] sm:$0xff]
        %v662 = vadd.f32 %v654, %v658
        %v663 = vadd.f32 %v655, %v659
        %v664 = vadd.f32 %v656, %v660
        %v665 = vadd.f32 %v657, %v661
        %vm666 = vcmp.ge.f32.partialorder %v662, 0.0
        %vm667 = vcmp.ge.f32.partialorder %v663, 0.0
        %vm668 = vcmp.ge.f32.partialorder %v664, 0.0
        %vm669 = vcmp.ge.f32.partialorder %v665, 0.0
        %v670 = vmul.f32 %v662, 0.2
        %v671 = vmul.f32 %v663, 0.2
        %v672 = vmul.f32 %v664, 0.2
        %v673 = vmul.f32 %v665, 0.2
        %v674 = vsel %vm666, %v662, %v670
        %v675 = vsel %vm667, %v663, %v671
        %v676 = vsel %vm668, %v664, %v672
        %v677 = vsel %vm669, %v665, %v673
        %v678 = vlaneseq
        %vm679 = vcmp.ge.s32.totalorder %v678, 0
        %vm680 = vcmp.lt.s32.totalorder %v678, 256
        %vm681 = vmand %vm679, %vm680
        %682 = vst.msk [vmem:[#allocation2] ss:$8 sm:$0x3] %vm681, 0.0
        %683 = vst.msk [vmem:[#allocation2] ss:$8 sm:$0x0] %vm681, 0.0
        %s684 = scalar_lea.vmem [#allocation2], 33
        %685 = vst.msk [vmem:[%s684] ss:$8 sm:$0x3] %vm681, 0.0
        %686 = vst.msk [vmem:[%s684] ss:$8 sm:$0x0] %vm681, 0.0
        %vm691 = vcmask 1040384
        %v692 = vrot.slane %v674, 7
        %v693 = vrot.slane %v675, 7
        %v694 = vrot.slane %v676, 7
        %v695 = vsel %vm691, %v692, %v694
        %v696 = vrot.slane %v677, 7
        %v697 = vsel %vm691, %v693, %v696
        %704 = vst [vmem:[#allocation2] sm:$0xfe] %v692
        %705 = vst [vmem:[#allocation2 + $0x8] sm:$0xfe] %v693
        %706 = vst [vmem:[#allocation2 + $0x10] sm:$0xff] %v695
        %707 = vst [vmem:[#allocation2 + $0x18] sm:$0xff] %v697
        %708 = vst [vmem:[#allocation2 + $0x20] sm:$0x1] %v694
        %709 = vst [vmem:[#allocation2 + $0x28] sm:$0x1] %v696
        %v710 = vld [vmem:[#allocation2] sm:$0xff]
        %v711 = vld [vmem:[#allocation2 + $0x8] sm:$0xff]
        %v712 = vld [vmem:[#allocation2 + $0x10] sm:$0xff]
        %v713 = vld [vmem:[#allocation2 + $0x18] sm:$0xff]
        %v714 = vld [vmem:[#allocation3] sm:$0xff]
        %v715 = vld [vmem:[#allocation3 + $0x8] sm:$0xff]
        %v716 = vld [vmem:[#allocation3 + $0x10] sm:$0xff]
        %v717 = vld [vmem:[#allocation3 + $0x18] sm:$0xff]
        %v718 = vld [vmem:[#allocation3 + $0x20] sm:$0xff]
        %v719 = vld [vmem:[#allocation3 + $0x28] sm:$0xff]
        %v720 = vld [vmem:[#allocation3 + $0x30] sm:$0xff]
        %v721 = vld [vmem:[#allocation3 + $0x38] sm:$0xff]
        %v722 = vld [vmem:[#allocation3 + $0x40] sm:$0xff]
        %v723 = vld [vmem:[#allocation3 + $0x48] sm:$0xff]
        %v724 = vld [vmem:[#allocation3 + $0x50] sm:$0xff]
        %v725 = vld [vmem:[#allocation3 + $0x58] sm:$0xff]
        %v726 = vld [vmem:[#allocation3 + $0x60] sm:$0xff]
        %v727 = vld [vmem:[#allocation3 + $0x68] sm:$0xff]
        %v728 = vld [vmem:[#allocation3 + $0x70] sm:$0xff]
        %v729 = vld [vmem:[#allocation3 + $0x78] sm:$0xff]
        %v730 = vld [vmem:[#allocation3 + $0x80] sm:$0xff]
        %v731 = vld [vmem:[#allocation3 + $0x88] sm:$0xff]
        %v732 = vld [vmem:[#allocation3 + $0x90] sm:$0xff]
        %v733 = vld [vmem:[#allocation3 + $0x98] sm:$0xff]
        %v734 = vld [vmem:[#allocation3 + $0xa0] sm:$0xff]
        %v735 = vld [vmem:[#allocation3 + $0xa8] sm:$0xff]
        %v736 = vld [vmem:[#allocation3 + $0xb0] sm:$0xff]
        %v737 = vld [vmem:[#allocation3 + $0xb8] sm:$0xff]
        %v738 = vld [vmem:[#allocation3 + $0xc0] sm:$0xff]
        %v739 = vld [vmem:[#allocation3 + $0xc8] sm:$0xff]
        %v740 = vld [vmem:[#allocation3 + $0xd0] sm:$0xff]
        %v741 = vld [vmem:[#allocation3 + $0xd8] sm:$0xff]
        %v742 = vld [vmem:[#allocation3 + $0xe0] sm:$0xff]
        %v743 = vld [vmem:[#allocation3 + $0xe8] sm:$0xff]
        %v744 = vld [vmem:[#allocation3 + $0xf0] sm:$0xff]
        %v745 = vld [vmem:[#allocation3 + $0xf8] sm:$0xff]
        %v746 = vld [vmem:[#allocation3 + $0x100] sm:$0xff]
        %v747 = vld [vmem:[#allocation3 + $0x108] sm:$0xff]
        %v748 = vld [vmem:[#allocation3 + $0x110] sm:$0xff]
        %v749 = vld [vmem:[#allocation3 + $0x118] sm:$0xff]
        %v750 = vld [vmem:[#allocation3 + $0x120] sm:$0xff]
        %v751 = vld [vmem:[#allocation3 + $0x128] sm:$0xff]
        %v752 = vld [vmem:[#allocation3 + $0x130] sm:$0xff]
        %v753 = vld [vmem:[#allocation3 + $0x138] sm:$0xff]
        %v754 = vld [vmem:[#allocation3 + $0x140] sm:$0xff]
        %v755 = vld [vmem:[#allocation3 + $0x148] sm:$0xff]
        %v756 = vld [vmem:[#allocation3 + $0x150] sm:$0xff]
        %v757 = vld [vmem:[#allocation3 + $0x158] sm:$0xff]
        %v758 = vld [vmem:[#allocation3 + $0x160] sm:$0xff]
        %v759 = vld [vmem:[#allocation3 + $0x168] sm:$0xff]
        %v760 = vld [vmem:[#allocation3 + $0x170] sm:$0xff]
        %v761 = vld [vmem:[#allocation3 + $0x178] sm:$0xff]
        %v762 = vld [vmem:[#allocation3 + $0x180] sm:$0xff]
        %v763 = vld [vmem:[#allocation3 + $0x188] sm:$0xff]
        %v764 = vld [vmem:[#allocation3 + $0x190] sm:$0xff]
        %v765 = vld [vmem:[#allocation3 + $0x198] sm:$0xff]
        %v766 = vld [vmem:[#allocation3 + $0x1a0] sm:$0xff]
        %v767 = vld [vmem:[#allocation3 + $0x1a8] sm:$0xff]
        %v768 = vld [vmem:[#allocation3 + $0x1b0] sm:$0xff]
        %v769 = vld [vmem:[#allocation3 + $0x1b8] sm:$0xff]
        %v770 = vld [vmem:[#allocation3 + $0x1c0] sm:$0xff]
        %v771 = vld [vmem:[#allocation3 + $0x1c8] sm:$0xff]
        %v772 = vld [vmem:[#allocation3 + $0x1d0] sm:$0xff]
        %v773 = vld [vmem:[#allocation3 + $0x1d8] sm:$0xff]
        %v774 = vld [vmem:[#allocation3 + $0x1e0] sm:$0xff]
        %v775 = vld [vmem:[#allocation3 + $0x1e8] sm:$0xff]
        %v776 = vld [vmem:[#allocation3 + $0x1f0] sm:$0xff]
        %v777 = vld [vmem:[#allocation3 + $0x1f8] sm:$0xff]
        %v778 = vld [vmem:[#allocation2] sm:$0xfe]
        %v779 = vld [vmem:[#allocation2 + $0x8] sm:$0xfe]
        %v780 = vld [vmem:[#allocation2 + $0x20] sm:$0x1]
        %v781 = vld [vmem:[#allocation2 + $0x28] sm:$0x1]
        %s782 = scalar_lea.vmem [#allocation3], 512
        %v783 = vld [vmem:[%s782] sm:$0xff]
        %v784 = vld [vmem:[%s782 + $0x8] sm:$0xff]
        %v785 = vld [vmem:[%s782 + $0x10] sm:$0xff]
        %v786 = vld [vmem:[%s782 + $0x18] sm:$0xff]
        %v787 = vld [vmem:[%s782 + $0x20] sm:$0xff]
        %v788 = vld [vmem:[%s782 + $0x28] sm:$0xff]
        %v789 = vld [vmem:[%s782 + $0x30] sm:$0xff]
        %v790 = vld [vmem:[%s782 + $0x38] sm:$0xff]
        %v791 = vld [vmem:[%s782 + $0x40] sm:$0xff]
        %v792 = vld [vmem:[%s782 + $0x48] sm:$0xff]
        %v793 = vld [vmem:[%s782 + $0x50] sm:$0xff]
        %v794 = vld [vmem:[%s782 + $0x58] sm:$0xff]
        %v795 = vld [vmem:[%s782 + $0x60] sm:$0xff]
        %v796 = vld [vmem:[%s782 + $0x68] sm:$0xff]
        %v797 = vld [vmem:[%s782 + $0x70] sm:$0xff]
        %v798 = vld [vmem:[%s782 + $0x78] sm:$0xff]
        %v799 = vld [vmem:[%s782 + $0x80] sm:$0xff]
        %v800 = vld [vmem:[%s782 + $0x88] sm:$0xff]
        %v801 = vld [vmem:[%s782 + $0x90] sm:$0xff]
        %v802 = vld [vmem:[%s782 + $0x98] sm:$0xff]
        %v803 = vld [vmem:[%s782 + $0xa0] sm:$0xff]
        %v804 = vld [vmem:[%s782 + $0xa8] sm:$0xff]
        %v805 = vld [vmem:[%s782 + $0xb0] sm:$0xff]
        %v806 = vld [vmem:[%s782 + $0xb8] sm:$0xff]
        %v807 = vld [vmem:[%s782 + $0xc0] sm:$0xff]
        %v808 = vld [vmem:[%s782 + $0xc8] sm:$0xff]
        %v809 = vld [vmem:[%s782 + $0xd0] sm:$0xff]
        %v810 = vld [vmem:[%s782 + $0xd8] sm:$0xff]
        %v811 = vld [vmem:[%s782 + $0xe0] sm:$0xff]
        %v812 = vld [vmem:[%s782 + $0xe8] sm:$0xff]
        %v813 = vld [vmem:[%s782 + $0xf0] sm:$0xff]
        %v814 = vld [vmem:[%s782 + $0xf8] sm:$0xff]
        %v815 = vld [vmem:[%s782 + $0x100] sm:$0xff]
        %v816 = vld [vmem:[%s782 + $0x108] sm:$0xff]
        %v817 = vld [vmem:[%s782 + $0x110] sm:$0xff]
        %v818 = vld [vmem:[%s782 + $0x118] sm:$0xff]
        %v819 = vld [vmem:[%s782 + $0x120] sm:$0xff]
        %v820 = vld [vmem:[%s782 + $0x128] sm:$0xff]
        %v821 = vld [vmem:[%s782 + $0x130] sm:$0xff]
        %v822 = vld [vmem:[%s782 + $0x138] sm:$0xff]
        %v823 = vld [vmem:[%s782 + $0x140] sm:$0xff]
        %v824 = vld [vmem:[%s782 + $0x148] sm:$0xff]
        %v825 = vld [vmem:[%s782 + $0x150] sm:$0xff]
        %v826 = vld [vmem:[%s782 + $0x158] sm:$0xff]
        %v827 = vld [vmem:[%s782 + $0x160] sm:$0xff]
        %v828 = vld [vmem:[%s782 + $0x168] sm:$0xff]
        %v829 = vld [vmem:[%s782 + $0x170] sm:$0xff]
        %v830 = vld [vmem:[%s782 + $0x178] sm:$0xff]
        %v831 = vld [vmem:[%s782 + $0x180] sm:$0xff]
        %v832 = vld [vmem:[%s782 + $0x188] sm:$0xff]
        %v833 = vld [vmem:[%s782 + $0x190] sm:$0xff]
        %v834 = vld [vmem:[%s782 + $0x198] sm:$0xff]
        %v835 = vld [vmem:[%s782 + $0x1a0] sm:$0xff]
        %v836 = vld [vmem:[%s782 + $0x1a8] sm:$0xff]
        %v837 = vld [vmem:[%s782 + $0x1b0] sm:$0xff]
        %v838 = vld [vmem:[%s782 + $0x1b8] sm:$0xff]
        %v839 = vld [vmem:[%s782 + $0x1c0] sm:$0xff]
        %v840 = vld [vmem:[%s782 + $0x1c8] sm:$0xff]
        %v841 = vld [vmem:[%s782 + $0x1d0] sm:$0xff]
        %v842 = vld [vmem:[%s782 + $0x1d8] sm:$0xff]
        %v843 = vld [vmem:[%s782 + $0x1e0] sm:$0xff]
        %v844 = vld [vmem:[%s782 + $0x1e8] sm:$0xff]
        %v845 = vld [vmem:[%s782 + $0x1f0] sm:$0xff]
        %v846 = vld [vmem:[%s782 + $0x1f8] sm:$0xff]
        %vm853 = vcmask 1046528
        %v854 = vrot.slane %v778, 1
        %v855 = vrot.slane %v712, 1
        %v856 = vsel %vm853, %v854, %v855
        %v857 = vrot.slane %v779, 1
        %v858 = vrot.slane %v713, 1
        %v859 = vsel %vm853, %v857, %v858
        %v860 = vrot.slane %v780, 1
        %v861 = vsel %vm853, %v855, %v860
        %v862 = vrot.slane %v781, 1
        %v863 = vsel %vm853, %v858, %v862
        %868 = vmatprep.subr.mxu0 %v814
        %869 = vmatpush1.msra.mxu0 %v813
        %870 = vmatprep.subr.mxu0 %v812
        %871 = vmatpush1.msra.mxu0 %v811
        %872 = vmatprep.subr.mxu0 %v810
        %873 = vmatpush1.msra.mxu0 %v809
        %874 = vmatprep.subr.mxu0 %v808
        %875 = vmatpush1.msra.mxu0 %v807
        %876 = vmatprep.subr.mxu0 %v806
        %877 = vmatpush1.msra.mxu0 %v805
        %878 = vmatprep.subr.mxu0 %v804
        %879 = vmatpush1.msra.mxu0 %v803
        %880 = vmatprep.subr.mxu0 %v802
        %881 = vmatpush1.msra.mxu0 %v801
        %882 = vmatprep.subr.mxu0 %v800
        %883 = vmatpush1.msra.mxu0 %v799
        %884 = vmatprep.subr.mxu0 %v798
        %885 = vmatpush1.msra.mxu0 %v797
        %886 = vmatprep.subr.mxu0 %v796
        %887 = vmatpush1.msra.mxu0 %v795
        %888 = vmatprep.subr.mxu0 %v794
        %889 = vmatpush1.msra.mxu0 %v793
        %890 = vmatprep.subr.mxu0 %v792
        %891 = vmatpush1.msra.mxu0 %v791
        %892 = vmatprep.subr.mxu0 %v790
        %893 = vmatpush1.msra.mxu0 %v789
        %894 = vmatprep.subr.mxu0 %v788
        %895 = vmatpush1.msra.mxu0 %v787
        %896 = vmatprep.subr.mxu0 %v786
        %897 = vmatpush1.msra.mxu0 %v785
        %898 = vmatprep.subr.mxu0 %v784
        %899 = vmatpush1.msra.mxu0 %v783
        %900 = vmatprep.subr.mxu0 %v846
        %901 = vmatpush2.msra.mxu0 %v845
        %902 = vmatprep.subr.mxu0 %v844
        %903 = vmatpush2.msra.mxu0 %v843
        %904 = vmatprep.subr.mxu0 %v842
        %905 = vmatpush2.msra.mxu0 %v841
        %906 = vmatprep.subr.mxu0 %v840
        %907 = vmatpush2.msra.mxu0 %v839
        %908 = vmatprep.subr.mxu0 %v838
        %909 = vmatpush2.msra.mxu0 %v837
        %910 = vmatprep.subr.mxu0 %v836
        %911 = vmatpush2.msra.mxu0 %v835
        %912 = vmatprep.subr.mxu0 %v834
        %913 = vmatpush2.msra.mxu0 %v833
        %914 = vmatprep.subr.mxu0 %v832
        %915 = vmatpush2.msra.mxu0 %v831
        %916 = vmatprep.subr.mxu0 %v830
        %917 = vmatpush2.msra.mxu0 %v829
        %918 = vmatprep.subr.mxu0 %v828
        %919 = vmatpush2.msra.mxu0 %v827
        %920 = vmatprep.subr.mxu0 %v826
        %921 = vmatpush2.msra.mxu0 %v825
        %922 = vmatprep.subr.mxu0 %v824
        %923 = vmatpush2.msra.mxu0 %v823
        %924 = vmatprep.subr.mxu0 %v822
        %925 = vmatpush2.msra.mxu0 %v821
        %926 = vmatprep.subr.mxu0 %v820
        %927 = vmatpush2.msra.mxu0 %v819
        %928 = vmatprep.subr.mxu0 %v818
        %929 = vmatpush2.msra.mxu0 %v817
        %930 = vmatprep.subr.mxu0 %v816
        %931 = vmatpush2.msra.mxu0 %v815
        %932 = vmatprep.mubr.f32.mxu0 %v859
        %933 = vmatmul.mubr.f32.gmra.mxu0 %v856
        %v934 = vpop.f32.mrf.mxu0
        %v935 = vadd.f32 0.0, %v934
        %v936 = vpop.f32.mrf.mxu0
        %v937 = vadd.f32 0.0, %v936
        %938 = vmatprep.mubr.f32.mxu0 %v863
        %939 = vmatmul.mubr.f32.gmra.mxu0 %v861
        %v940 = vpop.f32.mrf.mxu0
        %v941 = vadd.f32 0.0, %v940
        %v942 = vpop.f32.mrf.mxu0
        %v943 = vadd.f32 0.0, %v942
        %944 = vdwg.mxu0
        %945 = vmatprep.subr.mxu0 %v745
        %946 = vmatpush1.msra.mxu0 %v744
        %947 = vmatprep.subr.mxu0 %v743
        %948 = vmatpush1.msra.mxu0 %v742
        %949 = vmatprep.subr.mxu0 %v741
        %950 = vmatpush1.msra.mxu0 %v740
        %951 = vmatprep.subr.mxu0 %v739
        %952 = vmatpush1.msra.mxu0 %v738
        %953 = vmatprep.subr.mxu0 %v737
        %954 = vmatpush1.msra.mxu0 %v736
        %955 = vmatprep.subr.mxu0 %v735
        %956 = vmatpush1.msra.mxu0 %v734
        %957 = vmatprep.subr.mxu0 %v733
        %958 = vmatpush1.msra.mxu0 %v732
        %959 = vmatprep.subr.mxu0 %v731
        %960 = vmatpush1.msra.mxu0 %v730
        %961 = vmatprep.subr.mxu0 %v729
        %962 = vmatpush1.msra.mxu0 %v728
        %963 = vmatprep.subr.mxu0 %v727
        %964 = vmatpush1.msra.mxu0 %v726
        %965 = vmatprep.subr.mxu0 %v725
        %966 = vmatpush1.msra.mxu0 %v724
        %967 = vmatprep.subr.mxu0 %v723
        %968 = vmatpush1.msra.mxu0 %v722
        %969 = vmatprep.subr.mxu0 %v721
        %970 = vmatpush1.msra.mxu0 %v720
        %971 = vmatprep.subr.mxu0 %v719
        %972 = vmatpush1.msra.mxu0 %v718
        %973 = vmatprep.subr.mxu0 %v717
        %974 = vmatpush1.msra.mxu0 %v716
        %975 = vmatprep.subr.mxu0 %v715
        %976 = vmatpush1.msra.mxu0 %v714
        %977 = vmatprep.subr.mxu0 %v777
        %978 = vmatpush2.msra.mxu0 %v776
        %979 = vmatprep.subr.mxu0 %v775
        %980 = vmatpush2.msra.mxu0 %v774
        %981 = vmatprep.subr.mxu0 %v773
        %982 = vmatpush2.msra.mxu0 %v772
        %983 = vmatprep.subr.mxu0 %v771
        %984 = vmatpush2.msra.mxu0 %v770
        %985 = vmatprep.subr.mxu0 %v769
        %986 = vmatpush2.msra.mxu0 %v768
        %987 = vmatprep.subr.mxu0 %v767
        %988 = vmatpush2.msra.mxu0 %v766
        %989 = vmatprep.subr.mxu0 %v765
        %990 = vmatpush2.msra.mxu0 %v764
        %991 = vmatprep.subr.mxu0 %v763
        %992 = vmatpush2.msra.mxu0 %v762
        %993 = vmatprep.subr.mxu0 %v761
        %994 = vmatpush2.msra.mxu0 %v760
        %995 = vmatprep.subr.mxu0 %v759
        %996 = vmatpush2.msra.mxu0 %v758
        %997 = vmatprep.subr.mxu0 %v757
        %998 = vmatpush2.msra.mxu0 %v756
        %999 = vmatprep.subr.mxu0 %v755
        %1000 = vmatpush2.msra.mxu0 %v754
        %1001 = vmatprep.subr.mxu0 %v753
        %1002 = vmatpush2.msra.mxu0 %v752
        %1003 = vmatprep.subr.mxu0 %v751
        %1004 = vmatpush2.msra.mxu0 %v750
        %1005 = vmatprep.subr.mxu0 %v749
        %1006 = vmatpush2.msra.mxu0 %v748
        %1007 = vmatprep.subr.mxu0 %v747
        %1008 = vmatpush2.msra.mxu0 %v746
        %1009 = vmatprep.mubr.f32.mxu0 %v711
        %1010 = vmatmul.mubr.f32.gmra.mxu0 %v710
        %v1011 = vpop.f32.mrf.mxu0
        %v1012 = vadd.f32 %v935, %v1011
        %v1013 = vpop.f32.mrf.mxu0
        %v1014 = vadd.f32 %v937, %v1013
        %1015 = vmatprep.mubr.f32.mxu0 %v713
        %1016 = vmatmul.mubr.f32.gmra.mxu0 %v712
        %v1017 = vpop.f32.mrf.mxu0
        %v1018 = vadd.f32 %v941, %v1017
        %v1019 = vpop.f32.mrf.mxu0
        %v1020 = vadd.f32 %v943, %v1019
        %1021 = vdwg.mxu0
        %v1022 = vld [vmem:[#allocation2] sm:$0xfc]
        %v1023 = vld [vmem:[#allocation2 + $0x8] sm:$0xfc]
        %v1024 = vld [vmem:[#allocation2 + $0x20] sm:$0x3]
        %v1025 = vld [vmem:[#allocation2 + $0x28] sm:$0x3]
        %s1026 = scalar_lea.vmem [#allocation3], 1024
        %v1027 = vld [vmem:[%s1026] sm:$0xff]
        %v1028 = vld [vmem:[%s1026 + $0x8] sm:$0xff]
        %v1029 = vld [vmem:[%s1026 + $0x10] sm:$0xff]
        %v1030 = vld [vmem:[%s1026 + $0x18] sm:$0xff]
        %v1031 = vld [vmem:[%s1026 + $0x20] sm:$0xff]
        %v1032 = vld [vmem:[%s1026 + $0x28] sm:$0xff]
        %v1033 = vld [vmem:[%s1026 + $0x30] sm:$0xff]
        %v1034 = vld [vmem:[%s1026 + $0x38] sm:$0xff]
        %v1035 = vld [vmem:[%s1026 + $0x40] sm:$0xff]
        %v1036 = vld [vmem:[%s1026 + $0x48] sm:$0xff]
        %v1037 = vld [vmem:[%s1026 + $0x50] sm:$0xff]
        %v1038 = vld [vmem:[%s1026 + $0x58] sm:$0xff]
        %v1039 = vld [vmem:[%s1026 + $0x60] sm:$0xff]
        %v1040 = vld [vmem:[%s1026 + $0x68] sm:$0xff]
        %v1041 = vld [vmem:[%s1026 + $0x70] sm:$0xff]
        %v1042 = vld [vmem:[%s1026 + $0x78] sm:$0xff]
        %v1043 = vld [vmem:[%s1026 + $0x80] sm:$0xff]
        %v1044 = vld [vmem:[%s1026 + $0x88] sm:$0xff]
        %v1045 = vld [vmem:[%s1026 + $0x90] sm:$0xff]
        %v1046 = vld [vmem:[%s1026 + $0x98] sm:$0xff]
        %v1047 = vld [vmem:[%s1026 + $0xa0] sm:$0xff]
        %v1048 = vld [vmem:[%s1026 + $0xa8] sm:$0xff]
        %v1049 = vld [vmem:[%s1026 + $0xb0] sm:$0xff]
        %v1050 = vld [vmem:[%s1026 + $0xb8] sm:$0xff]
        %v1051 = vld [vmem:[%s1026 + $0xc0] sm:$0xff]
        %v1052 = vld [vmem:[%s1026 + $0xc8] sm:$0xff]
        %v1053 = vld [vmem:[%s1026 + $0xd0] sm:$0xff]
        %v1054 = vld [vmem:[%s1026 + $0xd8] sm:$0xff]
        %v1055 = vld [vmem:[%s1026 + $0xe0] sm:$0xff]
        %v1056 = vld [vmem:[%s1026 + $0xe8] sm:$0xff]
        %v1057 = vld [vmem:[%s1026 + $0xf0] sm:$0xff]
        %v1058 = vld [vmem:[%s1026 + $0xf8] sm:$0xff]
        %v1059 = vld [vmem:[%s1026 + $0x100] sm:$0xff]
        %v1060 = vld [vmem:[%s1026 + $0x108] sm:$0xff]
        %v1061 = vld [vmem:[%s1026 + $0x110] sm:$0xff]
        %v1062 = vld [vmem:[%s1026 + $0x118] sm:$0xff]
        %v1063 = vld [vmem:[%s1026 + $0x120] sm:$0xff]
        %v1064 = vld [vmem:[%s1026 + $0x128] sm:$0xff]
        %v1065 = vld [vmem:[%s1026 + $0x130] sm:$0xff]
        %v1066 = vld [vmem:[%s1026 + $0x138] sm:$0xff]
        %v1067 = vld [vmem:[%s1026 + $0x140] sm:$0xff]
        %v1068 = vld [vmem:[%s1026 + $0x148] sm:$0xff]
        %v1069 = vld [vmem:[%s1026 + $0x150] sm:$0xff]
        %v1070 = vld [vmem:[%s1026 + $0x158] sm:$0xff]
        %v1071 = vld [vmem:[%s1026 + $0x160] sm:$0xff]
        %v1072 = vld [vmem:[%s1026 + $0x168] sm:$0xff]
        %v1073 = vld [vmem:[%s1026 + $0x170] sm:$0xff]
        %v1074 = vld [vmem:[%s1026 + $0x178] sm:$0xff]
        %v1075 = vld [vmem:[%s1026 + $0x180] sm:$0xff]
        %v1076 = vld [vmem:[%s1026 + $0x188] sm:$0xff]
        %v1077 = vld [vmem:[%s1026 + $0x190] sm:$0xff]
        %v1078 = vld [vmem:[%s1026 + $0x198] sm:$0xff]
        %v1079 = vld [vmem:[%s1026 + $0x1a0] sm:$0xff]
        %v1080 = vld [vmem:[%s1026 + $0x1a8] sm:$0xff]
        %v1081 = vld [vmem:[%s1026 + $0x1b0] sm:$0xff]
        %v1082 = vld [vmem:[%s1026 + $0x1b8] sm:$0xff]
        %v1083 = vld [vmem:[%s1026 + $0x1c0] sm:$0xff]
        %v1084 = vld [vmem:[%s1026 + $0x1c8] sm:$0xff]
        %v1085 = vld [vmem:[%s1026 + $0x1d0] sm:$0xff]
        %v1086 = vld [vmem:[%s1026 + $0x1d8] sm:$0xff]
        %v1087 = vld [vmem:[%s1026 + $0x1e0] sm:$0xff]
        %v1088 = vld [vmem:[%s1026 + $0x1e8] sm:$0xff]
        %v1089 = vld [vmem:[%s1026 + $0x1f0] sm:$0xff]
        %v1090 = vld [vmem:[%s1026 + $0x1f8] sm:$0xff]
        %vm1095 = vcmask 1045504
        %v1096 = vrot.slane %v1022, 2
        %v1097 = vrot.slane %v712, 2
        %v1098 = vsel %vm1095, %v1096, %v1097
        %v1099 = vrot.slane %v1023, 2
        %v1100 = vrot.slane %v713, 2
        %v1101 = vsel %vm1095, %v1099, %v1100
        %v1102 = vrot.slane %v1024, 2
        %v1103 = vsel %vm1095, %v1097, %v1102
        %v1104 = vrot.slane %v1025, 2
        %v1105 = vsel %vm1095, %v1100, %v1104
        %1110 = vmatprep.subr.mxu0 %v1058
        %1111 = vmatpush1.msra.mxu0 %v1057
        %1112 = vmatprep.subr.mxu0 %v1056
        %1113 = vmatpush1.msra.mxu0 %v1055
        %1114 = vmatprep.subr.mxu0 %v1054
        %1115 = vmatpush1.msra.mxu0 %v1053
        %1116 = vmatprep.subr.mxu0 %v1052
        %1117 = vmatpush1.msra.mxu0 %v1051
        %1118 = vmatprep.subr.mxu0 %v1050
        %1119 = vmatpush1.msra.mxu0 %v1049
        %1120 = vmatprep.subr.mxu0 %v1048
        %1121 = vmatpush1.msra.mxu0 %v1047
        %1122 = vmatprep.subr.mxu0 %v1046
        %1123 = vmatpush1.msra.mxu0 %v1045
        %1124 = vmatprep.subr.mxu0 %v1044
        %1125 = vmatpush1.msra.mxu0 %v1043
        %1126 = vmatprep.subr.mxu0 %v1042
        %1127 = vmatpush1.msra.mxu0 %v1041
        %1128 = vmatprep.subr.mxu0 %v1040
        %1129 = vmatpush1.msra.mxu0 %v1039
        %1130 = vmatprep.subr.mxu0 %v1038
        %1131 = vmatpush1.msra.mxu0 %v1037
        %1132 = vmatprep.subr.mxu0 %v1036
        %1133 = vmatpush1.msra.mxu0 %v1035
        %1134 = vmatprep.subr.mxu0 %v1034
        %1135 = vmatpush1.msra.mxu0 %v1033
        %1136 = vmatprep.subr.mxu0 %v1032
        %1137 = vmatpush1.msra.mxu0 %v1031
        %1138 = vmatprep.subr.mxu0 %v1030
        %1139 = vmatpush1.msra.mxu0 %v1029
        %1140 = vmatprep.subr.mxu0 %v1028
        %1141 = vmatpush1.msra.mxu0 %v1027
        %1142 = vmatprep.subr.mxu0 %v1090
        %1143 = vmatpush2.msra.mxu0 %v1089
        %1144 = vmatprep.subr.mxu0 %v1088
        %1145 = vmatpush2.msra.mxu0 %v1087
        %1146 = vmatprep.subr.mxu0 %v1086
        %1147 = vmatpush2.msra.mxu0 %v1085
        %1148 = vmatprep.subr.mxu0 %v1084
        %1149 = vmatpush2.msra.mxu0 %v1083
        %1150 = vmatprep.subr.mxu0 %v1082
        %1151 = vmatpush2.msra.mxu0 %v1081
        %1152 = vmatprep.subr.mxu0 %v1080
        %1153 = vmatpush2.msra.mxu0 %v1079
        %1154 = vmatprep.subr.mxu0 %v1078
        %1155 = vmatpush2.msra.mxu0 %v1077
        %1156 = vmatprep.subr.mxu0 %v1076
        %1157 = vmatpush2.msra.mxu0 %v1075
        %1158 = vmatprep.subr.mxu0 %v1074
        %1159 = vmatpush2.msra.mxu0 %v1073
        %1160 = vmatprep.subr.mxu0 %v1072
        %1161 = vmatpush2.msra.mxu0 %v1071
        %1162 = vmatprep.subr.mxu0 %v1070
        %1163 = vmatpush2.msra.mxu0 %v1069
        %1164 = vmatprep.subr.mxu0 %v1068
        %1165 = vmatpush2.msra.mxu0 %v1067
        %1166 = vmatprep.subr.mxu0 %v1066
        %1167 = vmatpush2.msra.mxu0 %v1065
        %1168 = vmatprep.subr.mxu0 %v1064
        %1169 = vmatpush2.msra.mxu0 %v1063
        %1170 = vmatprep.subr.mxu0 %v1062
        %1171 = vmatpush2.msra.mxu0 %v1061
        %1172 = vmatprep.subr.mxu0 %v1060
        %1173 = vmatpush2.msra.mxu0 %v1059
        %1174 = vmatprep.mubr.f32.mxu0 %v1101
        %1175 = vmatmul.mubr.f32.gmra.mxu0 %v1098
        %v1176 = vpop.f32.mrf.mxu0
        %v1177 = vadd.f32 0.0, %v1176
        %v1178 = vpop.f32.mrf.mxu0
        %v1179 = vadd.f32 0.0, %v1178
        %1180 = vmatprep.mubr.f32.mxu0 %v1105
        %1181 = vmatmul.mubr.f32.gmra.mxu0 %v1103
        %v1182 = vpop.f32.mrf.mxu0
        %v1183 = vadd.f32 0.0, %v1182
        %v1184 = vpop.f32.mrf.mxu0
        %v1185 = vadd.f32 0.0, %v1184
        %1186 = vdwg.mxu0
        %v1187 = vadd.f32 %v1012, %v1177
        %v1188 = vadd.f32 %v1014, %v1179
        %v1189 = vadd.f32 %v1018, %v1183
        %v1190 = vadd.f32 %v1020, %v1185
        %v1191 = vld [vmem:[%s4] sm:$0xff]
        %v1192 = vld [vmem:[%s4 + $0x8] sm:$0xff]
        %v1193 = vld [vmem:[%s4 + $0x10] sm:$0xff]
        %v1194 = vld [vmem:[%s4 + $0x18] sm:$0xff]
        %v1195 = vadd.f32 %v1187, %v1191
        %v1196 = vadd.f32 %v1188, %v1192
        %v1197 = vadd.f32 %v1189, %v1193
        %v1198 = vadd.f32 %v1190, %v1194
        %vm1199 = vcmp.ge.f32.partialorder %v1195, 0.0
        %vm1200 = vcmp.ge.f32.partialorder %v1196, 0.0
        %vm1201 = vcmp.ge.f32.partialorder %v1197, 0.0
        %vm1202 = vcmp.ge.f32.partialorder %v1198, 0.0
        %v1203 = vmul.f32 %v1195, 0.2
        %v1204 = vmul.f32 %v1196, 0.2
        %v1205 = vmul.f32 %v1197, 0.2
        %v1206 = vmul.f32 %v1198, 0.2
        %v1207 = vsel %vm1199, %v1195, %v1203
        %v1208 = vsel %vm1200, %v1196, %v1204
        %v1209 = vsel %vm1201, %v1197, %v1205
        %v1210 = vsel %vm1202, %v1198, %v1206
        %v1211 = vld [vmem:[%s5] sm:$0xff]
        %v1212 = vld [vmem:[%s5 + $0x8] sm:$0xff]
        %v1213 = vld [vmem:[%s5 + $0x10] sm:$0xff]
        %v1214 = vld [vmem:[%s5 + $0x18] sm:$0xff]
        %v1215 = vld [vmem:[%s5 + $0x20] sm:$0xff]
        %v1216 = vld [vmem:[%s5 + $0x28] sm:$0xff]
        %v1217 = vld [vmem:[%s5 + $0x30] sm:$0xff]
        %v1218 = vld [vmem:[%s5 + $0x38] sm:$0xff]
        %v1219 = vld [vmem:[%s5 + $0x40] sm:$0xff]
        %v1220 = vld [vmem:[%s5 + $0x48] sm:$0xff]
        %v1221 = vld [vmem:[%s5 + $0x50] sm:$0xff]
        %v1222 = vld [vmem:[%s5 + $0x58] sm:$0xff]
        %v1223 = vld [vmem:[%s5 + $0x60] sm:$0xff]
        %v1224 = vld [vmem:[%s5 + $0x68] sm:$0xff]
        %v1225 = vld [vmem:[%s5 + $0x70] sm:$0xff]
        %v1226 = vld [vmem:[%s5 + $0x78] sm:$0xff]
        %v1227 = vld [vmem:[%s5 + $0x80] sm:$0xff]
        %v1228 = vld [vmem:[%s5 + $0x88] sm:$0xff]
        %v1229 = vld [vmem:[%s5 + $0x90] sm:$0xff]
        %v1230 = vld [vmem:[%s5 + $0x98] sm:$0xff]
        %v1231 = vld [vmem:[%s5 + $0xa0] sm:$0xff]
        %v1232 = vld [vmem:[%s5 + $0xa8] sm:$0xff]
        %v1233 = vld [vmem:[%s5 + $0xb0] sm:$0xff]
        %v1234 = vld [vmem:[%s5 + $0xb8] sm:$0xff]
        %v1235 = vld [vmem:[%s5 + $0xc0] sm:$0xff]
        %v1236 = vld [vmem:[%s5 + $0xc8] sm:$0xff]
        %v1237 = vld [vmem:[%s5 + $0xd0] sm:$0xff]
        %v1238 = vld [vmem:[%s5 + $0xd8] sm:$0xff]
        %v1239 = vld [vmem:[%s5 + $0xe0] sm:$0xff]
        %v1240 = vld [vmem:[%s5 + $0xe8] sm:$0xff]
        %v1241 = vld [vmem:[%s5 + $0xf0] sm:$0xff]
        %v1242 = vld [vmem:[%s5 + $0xf8] sm:$0xff]
        %v1243 = vld [vmem:[%s314 + $0x1] sm:$0xff]
        %v1244 = vld [vmem:[%s314 + $0x9] sm:$0xff]
        %v1245 = vld [vmem:[%s6] sm:$0xff]
        %v1246 = vld [vmem:[%s6 + $0x8] sm:$0xff]
        %v1247 = vld [vmem:[%s6 + $0x10] sm:$0xff]
        %v1248 = vld [vmem:[%s6 + $0x18] sm:$0xff]
        %v1249 = vld [vmem:[%s6 + $0x20] sm:$0xff]
        %v1250 = vld [vmem:[%s6 + $0x28] sm:$0xff]
        %v1251 = vld [vmem:[%s6 + $0x30] sm:$0xff]
        %v1252 = vld [vmem:[%s6 + $0x38] sm:$0xff]
        %v1253 = vld [vmem:[%s6 + $0x40] sm:$0xff]
        %v1254 = vld [vmem:[%s6 + $0x48] sm:$0xff]
        %v1255 = vld [vmem:[%s6 + $0x50] sm:$0xff]
        %v1256 = vld [vmem:[%s6 + $0x58] sm:$0xff]
        %v1257 = vld [vmem:[%s6 + $0x60] sm:$0xff]
        %v1258 = vld [vmem:[%s6 + $0x68] sm:$0xff]
        %v1259 = vld [vmem:[%s6 + $0x70] sm:$0xff]
        %v1260 = vld [vmem:[%s6 + $0x78] sm:$0xff]
        %1261 = vmatprep.subr.mxu0 0.0
        %1262 = vmatpush1.msra.mxu0 %v1260
        %1263 = vmatprep.subr.mxu0 0.0
        %1264 = vmatpush1.msra.mxu0 %v1259
        %1265 = vmatprep.subr.mxu0 0.0
        %1266 = vmatpush1.msra.mxu0 %v1258
        %1267 = vmatprep.subr.mxu0 0.0
        %1268 = vmatpush1.msra.mxu0 %v1257
        %1269 = vmatprep.subr.mxu0 0.0
        %1270 = vmatpush1.msra.mxu0 %v1256
        %1271 = vmatprep.subr.mxu0 0.0
        %1272 = vmatpush1.msra.mxu0 %v1255
        %1273 = vmatprep.subr.mxu0 0.0
        %1274 = vmatpush1.msra.mxu0 %v1254
        %1275 = vmatprep.subr.mxu0 0.0
        %1276 = vmatpush1.msra.mxu0 %v1253
        %1277 = vmatprep.subr.mxu0 0.0
        %1278 = vmatpush1.msra.mxu0 %v1252
        %1279 = vmatprep.subr.mxu0 0.0
        %1280 = vmatpush1.msra.mxu0 %v1251
        %1281 = vmatprep.subr.mxu0 0.0
        %1282 = vmatpush1.msra.mxu0 %v1250
        %1283 = vmatprep.subr.mxu0 0.0
        %1284 = vmatpush1.msra.mxu0 %v1249
        %1285 = vmatprep.subr.mxu0 0.0
        %1286 = vmatpush1.msra.mxu0 %v1248
        %1287 = vmatprep.subr.mxu0 0.0
        %1288 = vmatpush1.msra.mxu0 %v1247
        %1289 = vmatprep.subr.mxu0 0.0
        %1290 = vmatpush1.msra.mxu0 %v1246
        %1291 = vmatprep.subr.mxu0 0.0
        %1292 = vmatpush1.msra.mxu0 %v1245
        %1293 = vmatprep.subr.mxu0 0.0
        %1294 = vmatpush2.msra.mxu0 0.0
        %1295 = vmatprep.subr.mxu0 0.0
        %1296 = vmatpush2.msra.mxu0 0.0
        %1297 = vmatprep.subr.mxu0 0.0
        %1298 = vmatpush2.msra.mxu0 0.0
        %1299 = vmatprep.subr.mxu0 0.0
        %1300 = vmatpush2.msra.mxu0 0.0
        %1301 = vmatprep.subr.mxu0 0.0
        %1302 = vmatpush2.msra.mxu0 0.0
        %1303 = vmatprep.subr.mxu0 0.0
        %1304 = vmatpush2.msra.mxu0 0.0
        %1305 = vmatprep.subr.mxu0 0.0
        %1306 = vmatpush2.msra.mxu0 0.0
        %1307 = vmatprep.subr.mxu0 0.0
        %1308 = vmatpush2.msra.mxu0 0.0
        %1309 = vmatprep.subr.mxu0 0.0
        %1310 = vmatpush2.msra.mxu0 0.0
        %1311 = vmatprep.subr.mxu0 0.0
        %1312 = vmatpush2.msra.mxu0 0.0
        %1313 = vmatprep.subr.mxu0 0.0
        %1314 = vmatpush2.msra.mxu0 0.0
        %1315 = vmatprep.subr.mxu0 0.0
        %1316 = vmatpush2.msra.mxu0 0.0
        %1317 = vmatprep.subr.mxu0 0.0
        %1318 = vmatpush2.msra.mxu0 0.0
        %1319 = vmatprep.subr.mxu0 0.0
        %1320 = vmatpush2.msra.mxu0 0.0
        %1321 = vmatprep.subr.mxu0 0.0
        %1322 = vmatpush2.msra.mxu0 0.0
        %1323 = vmatprep.subr.mxu0 0.0
        %1324 = vmatpush2.msra.mxu0 0.0
        %1325 = vmatprep.mubr.f32.mxu0 0.0
        %1326 = vmatmul.mubr.f32.gmra.mxu0 %v1243
        %v1327 = vpop.f32.mrf.mxu0
        %v1328 = vadd.f32 0.0, %v1327
        %v1329 = vpop.f32.mrf.mxu0
        %1330 = vmatprep.mubr.f32.mxu0 0.0
        %1331 = vmatmul.mubr.f32.gmra.mxu0 %v1244
        %v1332 = vpop.f32.mrf.mxu0
        %v1333 = vadd.f32 0.0, %v1332
        %v1334 = vpop.f32.mrf.mxu0
        %1335 = vdwg.mxu0
        %1336 = vmatprep.subr.mxu0 0.0
        %1337 = vmatpush1.msra.mxu0 %v1226
        %1338 = vmatprep.subr.mxu0 0.0
        %1339 = vmatpush1.msra.mxu0 %v1225
        %1340 = vmatprep.subr.mxu0 0.0
        %1341 = vmatpush1.msra.mxu0 %v1224
        %1342 = vmatprep.subr.mxu0 0.0
        %1343 = vmatpush1.msra.mxu0 %v1223
        %1344 = vmatprep.subr.mxu0 0.0
        %1345 = vmatpush1.msra.mxu0 %v1222
        %1346 = vmatprep.subr.mxu0 0.0
        %1347 = vmatpush1.msra.mxu0 %v1221
        %1348 = vmatprep.subr.mxu0 0.0
        %1349 = vmatpush1.msra.mxu0 %v1220
        %1350 = vmatprep.subr.mxu0 0.0
        %1351 = vmatpush1.msra.mxu0 %v1219
        %1352 = vmatprep.subr.mxu0 0.0
        %1353 = vmatpush1.msra.mxu0 %v1218
        %1354 = vmatprep.subr.mxu0 0.0
        %1355 = vmatpush1.msra.mxu0 %v1217
        %1356 = vmatprep.subr.mxu0 0.0
        %1357 = vmatpush1.msra.mxu0 %v1216
        %1358 = vmatprep.subr.mxu0 0.0
        %1359 = vmatpush1.msra.mxu0 %v1215
        %1360 = vmatprep.subr.mxu0 0.0
        %1361 = vmatpush1.msra.mxu0 %v1214
        %1362 = vmatprep.subr.mxu0 0.0
        %1363 = vmatpush1.msra.mxu0 %v1213
        %1364 = vmatprep.subr.mxu0 0.0
        %1365 = vmatpush1.msra.mxu0 %v1212
        %1366 = vmatprep.subr.mxu0 0.0
        %1367 = vmatpush1.msra.mxu0 %v1211
        %1368 = vmatprep.subr.mxu0 0.0
        %1369 = vmatpush2.msra.mxu0 %v1242
        %1370 = vmatprep.subr.mxu0 0.0
        %1371 = vmatpush2.msra.mxu0 %v1241
        %1372 = vmatprep.subr.mxu0 0.0
        %1373 = vmatpush2.msra.mxu0 %v1240
        %1374 = vmatprep.subr.mxu0 0.0
        %1375 = vmatpush2.msra.mxu0 %v1239
        %1376 = vmatprep.subr.mxu0 0.0
        %1377 = vmatpush2.msra.mxu0 %v1238
        %1378 = vmatprep.subr.mxu0 0.0
        %1379 = vmatpush2.msra.mxu0 %v1237
        %1380 = vmatprep.subr.mxu0 0.0
        %1381 = vmatpush2.msra.mxu0 %v1236
        %1382 = vmatprep.subr.mxu0 0.0
        %1383 = vmatpush2.msra.mxu0 %v1235
        %1384 = vmatprep.subr.mxu0 0.0
        %1385 = vmatpush2.msra.mxu0 %v1234
        %1386 = vmatprep.subr.mxu0 0.0
        %1387 = vmatpush2.msra.mxu0 %v1233
        %1388 = vmatprep.subr.mxu0 0.0
        %1389 = vmatpush2.msra.mxu0 %v1232
        %1390 = vmatprep.subr.mxu0 0.0
        %1391 = vmatpush2.msra.mxu0 %v1231
        %1392 = vmatprep.subr.mxu0 0.0
        %1393 = vmatpush2.msra.mxu0 %v1230
        %1394 = vmatprep.subr.mxu0 0.0
        %1395 = vmatpush2.msra.mxu0 %v1229
        %1396 = vmatprep.subr.mxu0 0.0
        %1397 = vmatpush2.msra.mxu0 %v1228
        %1398 = vmatprep.subr.mxu0 0.0
        %1399 = vmatpush2.msra.mxu0 %v1227
        %1400 = vmatprep.mubr.f32.mxu0 %v1208
        %1401 = vmatmul.mubr.f32.gmra.mxu0 %v1207
        %v1402 = vpop.f32.mrf.mxu0
        %v1403 = vadd.f32 %v1328, %v1402
        %v1404 = vpop.f32.mrf.mxu0
        %1405 = vmatprep.mubr.f32.mxu0 %v1210
        %1406 = vmatmul.mubr.f32.gmra.mxu0 %v1209
        %v1407 = vpop.f32.mrf.mxu0
        %v1408 = vadd.f32 %v1333, %v1407
        %v1409 = vpop.f32.mrf.mxu0
        %1410 = vdwg.mxu0
        %v1413 = vcombine.high %v1403, %v1403
        %v1415 = vunpack.c.l.s4 1983009808
        %v1416 = vunpack.c.0.s8 %v1415
        %v1417 = vlaneseq
        %v1418 = vshrl.u32 %v1417, 7
        %v1419 = vsub.s32 %v1416, %v1418
        %v1420 = vrot.slane %v1403, %v1419
        %v1422 = vunpack.c.l.s4 1983009808
        %v1423 = vunpack.c.0.s8 %v1422
        %v1424 = vlaneseq
        %v1425 = vshrl.u32 %v1424, 7
        %v1426 = vsub.s32 %v1423, %v1425
        %v1427 = vrot.slane %v1413, %v1426
        %v1428 = vcombine.high %v1420, %v1420
        %v1429 = vcombine.high %v1427, %v1427
        %v1430 = vcombine.high %v1408, %v1408
        %v1432 = vunpack.c.l.s4 1983009808
        %v1433 = vunpack.c.0.s8 %v1432
        %v1434 = vlaneseq
        %v1435 = vshrl.u32 %v1434, 7
        %v1436 = vsub.s32 %v1433, %v1435
        %v1437 = vrot.slane %v1408, %v1436
        %v1439 = vunpack.c.l.s4 1983009808
        %v1440 = vunpack.c.0.s8 %v1439
        %v1441 = vlaneseq
        %v1442 = vshrl.u32 %v1441, 7
        %v1443 = vsub.s32 %v1440, %v1442
        %v1444 = vrot.slane %v1430, %v1443
        %v1445 = vcombine.high %v1437, %v1437
        %v1446 = vcombine.high %v1444, %v1444
        %vm1455 = vcmask 1041408
        %v1456 = vsel %vm1455, %v1420, 0.0
        %v1457 = vrot.slane %v1456, 4
        %v1458 = vadd.f32 %v1456, %v1457
        %v1459 = vrot.slane %v1458, 2
        %v1460 = vadd.f32 %v1458, %v1459
        %v1461 = vrot.slane %v1460, 1
        %v1462 = vadd.f32 %v1460, %v1461
        %v1463 = vsel %vm1455, %v1428, 0.0
        %v1464 = vrot.slane %v1463, 4
        %v1465 = vadd.f32 %v1463, %v1464
        %v1466 = vrot.slane %v1465, 2
        %v1467 = vadd.f32 %v1465, %v1466
        %v1468 = vrot.slane %v1467, 1
        %v1469 = vadd.f32 %v1467, %v1468
        %v1470 = vsel %vm1455, %v1427, 0.0
        %v1471 = vrot.slane %v1470, 4
        %v1472 = vadd.f32 %v1470, %v1471
        %v1473 = vrot.slane %v1472, 2
        %v1474 = vadd.f32 %v1472, %v1473
        %v1475 = vrot.slane %v1474, 1
        %v1476 = vadd.f32 %v1474, %v1475
        %v1477 = vsel %vm1455, %v1429, 0.0
        %v1478 = vrot.slane %v1477, 4
        %v1479 = vadd.f32 %v1477, %v1478
        %v1480 = vrot.slane %v1479, 2
        %v1481 = vadd.f32 %v1479, %v1480
        %v1482 = vrot.slane %v1481, 1
        %v1483 = vadd.f32 %v1481, %v1482
        %v1484 = vsel %vm1455, %v1437, 0.0
        %v1485 = vrot.slane %v1484, 4
        %v1486 = vadd.f32 %v1484, %v1485
        %v1487 = vrot.slane %v1486, 2
        %v1488 = vadd.f32 %v1486, %v1487
        %v1489 = vrot.slane %v1488, 1
        %v1490 = vadd.f32 %v1488, %v1489
        %v1491 = vsel %vm1455, %v1445, 0.0
        %v1492 = vrot.slane %v1491, 4
        %v1493 = vadd.f32 %v1491, %v1492
        %v1494 = vrot.slane %v1493, 2
        %v1495 = vadd.f32 %v1493, %v1494
        %v1496 = vrot.slane %v1495, 1
        %v1497 = vadd.f32 %v1495, %v1496
        %v1498 = vsel %vm1455, %v1444, 0.0
        %v1499 = vrot.slane %v1498, 4
        %v1500 = vadd.f32 %v1498, %v1499
        %v1501 = vrot.slane %v1500, 2
        %v1502 = vadd.f32 %v1500, %v1501
        %v1503 = vrot.slane %v1502, 1
        %v1504 = vadd.f32 %v1502, %v1503
        %v1505 = vsel %vm1455, %v1446, 0.0
        %v1506 = vrot.slane %v1505, 4
        %v1507 = vadd.f32 %v1505, %v1506
        %v1508 = vrot.slane %v1507, 2
        %v1509 = vadd.f32 %v1507, %v1508
        %v1510 = vrot.slane %v1509, 1
        %v1511 = vadd.f32 %v1509, %v1510
        %v1512 = vld [vmem:[%s7] sm:$0x1]
        %v1514 = vlaneseq
        %v1515 = vshrl.u32 %v1514, 7
        %v1516 = vsub.s32 0, %v1515
        %v1517 = vrot.slane %v1512, %v1516
        %v1519 = vadd.f32 %v1462, %v1517
        %v1520 = vadd.f32 %v1469, %v1517
        %v1521 = vadd.f32 %v1476, %v1517
        %v1522 = vadd.f32 %v1483, %v1517
        %v1523 = vadd.f32 %v1490, %v1517
        %v1524 = vadd.f32 %v1497, %v1517
        %v1525 = vadd.f32 %v1504, %v1517
        %v1526 = vadd.f32 %v1511, %v1517
        %v1535 = vrot.slane %v1520, 7
        %vm1536 = vcmask 1041409
        %v1537 = vsel %vm1536, %v1535, %v1519
        %v1538 = vrot.slane %v1521, 6
        %vm1539 = vcmask 1042434
        %v1540 = vsel %vm1539, %v1538, %v1537
        %v1541 = vrot.slane %v1522, 5
        %vm1542 = vcmask 1043459
        %v1543 = vsel %vm1542, %v1541, %v1540
        %v1544 = vrot.slane %v1523, 4
        %vm1545 = vcmask 1044484
        %v1546 = vsel %vm1545, %v1544, %v1543
        %v1547 = vrot.slane %v1524, 3
        %vm1548 = vcmask 1045509
        %v1549 = vsel %vm1548, %v1547, %v1546
        %v1550 = vrot.slane %v1525, 2
        %vm1551 = vcmask 1046534
        %v1552 = vsel %vm1551, %v1550, %v1549
        %v1553 = vrot.slane %v1526, 1
        %vm1554 = vcmask 1047559
        %v1555 = vsel %vm1554, %v1553, %v1552
        %1557 = vst [vmem:[%s318] sm:$0xff] %v1555
        %p1558 = scmp.lt.s32.totalorder %s20, 1
        %s1559 = scalar_select %p1558, %s20, 1
        %s1560 = smul.addr %s1559, 8
        %s1561 = scalar_lea.vmem %s8, %s1560
        // Predicated region
        $region57: #{volume_render_res_block.1} parent=51 // pred_check
          %p1562 = pneg %p211
        $region58: #{volume_render_res_block.1} parent=51 // pred_check_branch
          %1564 = sbr.rel (%p1562) target = $region60
        $region59: #{volume_render_res_block.1} parent=51 // pred_region
          _
        $region60: #{volume_render_res_block.1} parent=51 // pred_fallthru
          _
      $region52: #{volume_render_res_block.1} parent=5 // pred_fallthru
        _
      %p1565 = scmp.le.s32.totalorder 2, %s15
      // Predicated region
      $region61: #{volume_render_res_block.1} parent=5 // pred_check
        %p1566 = pneg %p1565
      $region62: #{volume_render_res_block.1} parent=5 // pred_check_branch
        %1568 = sbr.rel (%p1566) target = $region64
      $region63: #{volume_render_res_block.1} parent=5 // pred_region
        %s1569 = ssub.s32 %s15, 2
        // Predicated region
        $region65: #{volume_render_res_block.1} parent=63 // pred_check
          %p1570 = pneg %p217
        $region66: #{volume_render_res_block.1} parent=63 // pred_check_branch
          %1572 = sbr.rel (%p1570) target = $region68
        $region67: #{volume_render_res_block.1} parent=63 // pred_region
          %p1573 = scmp.lt.s32.totalorder %s21, 1
          %s1574 = scalar_select %p1573, %s21, 1
          %s1575 = smul.addr %s1574, 8
          %s1576 = scalar_lea.vmem %s8, %s1575
        $region68: #{volume_render_res_block.1} parent=63 // pred_fallthru
          _
      $region64: #{volume_render_res_block.1} parent=5 // pred_fallthru
        _
    $region6: #{volume_render_res_block.1} parent=1 // loop_footer
      %s19 = sadd.s32 1, %s15
    $region7: #{volume_render_res_block.1} parent=1 // loop_footer_branch
      %14 = sbr.rel target = $region3
    $region8: #{volume_render_res_block.1} parent=1 // loop_exit
      _
    %1577 = vsyncpa [#allocation4], 1
    %s1578 = scalar_lea.sflag [#allocation4], 1
    %1579 = vsyncpa %s1578, 1

</llo_original>
